<compile_context>
chip_gen: v5e
topology: v5e:2x2
jax: 0.10.0
libtpu: 0.0.40
codegen_flags: <defaults>
</compile_context>

<pallas_src>
import functools

import jax
import jax.numpy as jnp
from jax import lax
from jax.experimental import pallas as pl
from jax.experimental.pallas import tpu as pltpu


def _silu(v):
    return v * jax.nn.sigmoid(v)


def _round_up(v, m):
    return -(-v // m) * m


# --------------------------------------------------------------------------- #
# Kernel
# --------------------------------------------------------------------------- #
def _eiestem_kernel(xc_ref, w1_ref, b1_ref, w2_ref, b2_ref, w3_ref, b3_ref,
                    out_ref, ppad_ref,
                    *, Bblk, inc, hidc, H1, W1, H2, W2):
    f32 = jnp.float32
    bf16 = jnp.bfloat16

    # ---- conv1: one im2col matmul (im2col + bf16 cast already done in the
    # wrapper, so the LHS minor dim is 9*inc and there are no in-kernel
    # stride-2 loads / lane concats for this conv).
    im2col1 = xc_ref[...].reshape(Bblk * H1 * W1, 9 * inc)          # bf16
    h1 = _silu(jnp.dot(im2col1, w1_ref[...],
                       preferred_element_type=f32) + b1_ref[...])
    h1 = h1.reshape(Bblk, H1, W1, hidc)

    # ---- 1-px zero border of the padded scratch.  It supplies both the
    # MaxPool right/bottom zero pad and conv2's k3 padding.
    # TODO(synk): zero once per core when a per-core first-step predicate is
    #             available (program_id(0)==0 is wrong with the parallel axis).
    ppad_ref[:, 0:1, :, :] = jnp.zeros((Bblk, 1, W1 + 2, hidc), f32)
    ppad_ref[:, H1 + 1:H1 + 2, :, :] = jnp.zeros((Bblk, 1, W1 + 2, hidc), f32)
    ppad_ref[:, :, 0:1, :] = jnp.zeros((Bblk, H1 + 2, 1, hidc), f32)
    ppad_ref[:, :, W1 + 1:W1 + 2, :] = jnp.zeros((Bblk, H1 + 2, 1, hidc), f32)

    # ---- pool branch: ZeroPad2d((0,1,0,1)) + MaxPool2d(2, s=1).
    # Write conv1's output into the scratch interior, form the 2x2 max from
    # four contiguous shifted-window reads (zero border == pool pad) and
    # overwrite the interior with the pooled map (no shifted concat temps).
    ppad_ref[:, 1:H1 + 1, 1:W1 + 1, :] = h1
    p00 = ppad_ref[:, 1:H1 + 1, 1:W1 + 1, :]
    p01 = ppad_ref[:, 1:H1 + 1, 2:W1 + 2, :]
    p10 = ppad_ref[:, 2:H1 + 2, 1:W1 + 1, :]
    p11 = ppad_ref[:, 2:H1 + 2, 2:W1 + 2, :]
    ppad_ref[:, 1:H1 + 1, 1:W1 + 1, :] = jnp.maximum(jnp.maximum(p00, p01),
                                                     jnp.maximum(p10, p11))

    # ---- sobel branch of the reference is identically zero (Conv3d depth
    # padding quirk), so conv2 only consumes the pool half of its weights.
    taps2 = [
        ppad_ref[:, pl.ds(kh, H2, stride=2), pl.ds(kw, W2, stride=2), :]
        .reshape(Bblk * H2 * W2, hidc)
        for kh in range(3) for kw in range(3)
    ]
    im2col2 = jnp.concatenate(taps2, axis=-1).astype(bf16)          # (M2, 9*hidc)
    h2 = _silu(jnp.dot(im2col2, w2_ref[...],
                       preferred_element_type=f32) + b2_ref[...])

    # ---- conv3: 1x1; ouc is padded to a lane-dense multiple of 128 in the
    # wrapper so this store is an unmasked vst.
    y = _silu(jnp.dot(h2.astype(bf16), w3_ref[...],
                      preferred_element_type=f32) + b3_ref[...])
    out_ref[...] = y.reshape(Bblk, H2 * W2, -1)


# --------------------------------------------------------------------------- #
# Sizing helpers
# --------------------------------------------------------------------------- #
def _vmem_limit_bytes():
    """Per-generation scoped VMEM limit: ~48 MiB on v7x (64 MiB/TC), ~100 MiB
    on v5e/v6e (128 MiB); conservative fallback if the query is unavailable."""
    try:
        cap = pltpu.get_tpu_info().vmem_capacity_bytes
    except Exception:
        cap = 64 * 1024 * 1024
    return int(min(max(cap - 16 * 1024 * 1024, 32 * 1024 * 1024),
                   100 * 1024 * 1024))


def _per_image_vmem_bytes(inc, hidc, ouc_p, H1, W1, H2, W2):
    lane = lambda c: _round_up(c, 128)                 # lane padding to 128
    return int(
        2 * H1 * W1 * lane(9 * inc) * 2                # x_cols (dbl-buffered, bf16)
        + (H1 + 2) * (W1 + 2) * lane(hidc) * 4         # padded pooled scratch (f32)
        + 3 * H1 * W1 * lane(hidc) * 4                 # conv1/pool f32 temporaries
        + H2 * W2 * lane(9 * hidc) * 2                 # im2col2 (bf16)
        + 2 * H2 * W2 * ouc_p * 4)                     # output block (dbl-buffered)


def _pick_bblk(B, per_image_bytes, vmem_limit):
    """Largest divisor of B (capped at 16) whose working set fits the budget."""
    budget = max(vmem_limit // 2, per_image_bytes)     # headroom for weights etc.
    bblk = int(max(1, min(B, 16, budget // max(per_image_bytes, 1))))
    while B % bblk:
        bblk -= 1
    return bblk


# --------------------------------------------------------------------------- #
# Wrapper
# --------------------------------------------------------------------------- #
def eiestem_pallas(x_nchw, params):
    """x_nchw: (B, inc, H, W) float32. Returns (B, ouc, H//4, W//4) float32."""
    w1k, b1, w2k, b2, w3k, b3 = params
    B, inc, H, W = x_nchw.shape
    hidc = w1k.shape[-1]
    ouc = w3k.shape[-1]
    H1, W1 = (H - 1) // 2 + 1, (W - 1) // 2 + 1      # after conv1 (k3, s2, p1)
    H2, W2 = (H1 - 1) // 2 + 1, (W1 - 1) // 2 + 1    # after conv2 (k3, s2, p1)
    ouc_p = _round_up(ouc, 128)                      # lane-dense output store

    # conv1 im2col on the XLA side: one fused transpose/pad/gather pass that
    # also casts the MXU operand to bf16.  Tap order is (kh, kw, cin) to match
    # the weight layout below.
    x_pad = jnp.pad(jnp.transpose(x_nchw, (0, 2, 3, 1)),
                    ((0, 0), (1, 1), (1, 1), (0, 0)))
    taps = [x_pad[:, kh:kh + 2 * H1 - 1:2, kw:kw + 2 * W1 - 1:2, :]
            for kh in range(3) for kw in range(3)]
    x_cols = jnp.concatenate(taps, axis=-1).reshape(B, H1 * W1, 9 * inc)
    x_cols = x_cols.astype(jnp.bfloat16)

    # MXU operands pre-cast to bf16; biases / accumulation stay f32.
    w1b = w1k.astype(jnp.bfloat16)
    w2b = w2k.astype(jnp.bfloat16)
    w3b = jnp.pad(w3k, ((0, 0), (0, ouc_p - ouc))).astype(jnp.bfloat16)
    b3p = jnp.pad(b3, ((0, 0), (0, ouc_p - ouc)))

    vmem_limit = _vmem_limit_bytes()
    bblk = _pick_bblk(
        B, _per_image_vmem_bytes(inc, hidc, ouc_p, H1, W1, H2, W2), vmem_limit)

    kernel = functools.partial(_eiestem_kernel, Bblk=bblk, inc=inc, hidc=hidc,
                               H1=H1, W1=W1, H2=H2, W2=W2)

    out_p = pl.pallas_call(
        kernel,
        out_shape=jax.ShapeDtypeStruct((B, H2 * W2, ouc_p), jnp.float32),
        grid_spec=pltpu.PrefetchScalarGridSpec(
            num_scalar_prefetch=0,
            grid=(B // bblk,),
            in_specs=[
                pl.BlockSpec((bblk, H1 * W1, 9 * inc), lambda b: (b, 0, 0)),
                pl.BlockSpec((9 * inc, hidc), lambda b: (0, 0)),    # w1 (im2col)
                pl.BlockSpec((1, hidc), lambda b: (0, 0)),          # b1
                pl.BlockSpec((9 * hidc, hidc), lambda b: (0, 0)),   # w2 (pool half)
                pl.BlockSpec((1, hidc), lambda b: (0, 0)),          # b2
                pl.BlockSpec((hidc, ouc_p), lambda b: (0, 0)),      # w3 (padded)
                pl.BlockSpec((1, ouc_p), lambda b: (0, 0)),         # b3 (padded)
            ],
            out_specs=pl.BlockSpec((bblk, H2 * W2, ouc_p), lambda b: (b, 0, 0)),
            scratch_shapes=[
                pltpu.VMEM((bblk, H1 + 2, W1 + 2, hidc), jnp.float32),
            ],
        ),
        compiler_params=pltpu.CompilerParams(
            dimension_semantics=("parallel",),     # batch blocks across TCs
            vmem_limit_bytes=vmem_limit,
        ),
    )(x_cols, w1b, b1, w2b, b2, w3b, b3p)

    out = out_p[..., :ouc].reshape(B, H2, W2, ouc)
    # TODO(synk): emit a channels-major (B, ouc, H2*W2) block from the kernel to
    #             delete this transpose at production shapes.
    return jnp.transpose(out, (0, 3, 1, 2))


# ------------------------- parameter construction (deterministic) ------------
def _fold_bn(w_oihw, gamma, beta, mean, var, eps=1e-3):
    scale = gamma / jnp.sqrt(var + eps)
    return w_oihw * scale[:, None, None, None], beta - mean * scale


def make_params(inc, hidc, ouc, key):
    k1, k2, k3 = jax.random.split(key, 3)

    def bn(c, off):
        gamma = 1.0 + 0.1 * jnp.arange(c, dtype=jnp.float32) / c
        beta = 0.05 * jnp.arange(c, dtype=jnp.float32) / c - off
        mean = 0.02 * jnp.arange(c, dtype=jnp.float32) / c
        var = 1.0 + 0.2 * jnp.arange(c, dtype=jnp.float32) / c
        return gamma, beta, mean, var

    w1 = jax.random.normal(k1, (hidc, inc, 3, 3), jnp.float32) * 0.3
    w2 = jax.random.normal(k2, (hidc, 2 * hidc, 3, 3), jnp.float32) * 0.3
    w3 = jax.random.normal(k3, (ouc, hidc, 1, 1), jnp.float32) * 0.3

    w1f, b1 = _fold_bn(w1, *bn(hidc, 0.02))
    w2f, b2 = _fold_bn(w2, *bn(hidc, 0.01))
    w3f, b3 = _fold_bn(w3, *bn(ouc, 0.03))

    # Kernel-side im2col layouts: rows ordered (kh, kw, cin), matching the
    # wrapper/kernel tap ordering.  conv2 keeps ONLY input channels
    # [hidc:2*hidc] (the pool branch) -- the sobel half is identically zero.
    w1k = jnp.transpose(w1f, (2, 3, 1, 0)).reshape(9 * inc, hidc)
    w2k = jnp.transpose(w2f[:, hidc:, :, :], (2, 3, 1, 0)).reshape(9 * hidc, hidc)
    w3k = jnp.transpose(w3f[:, :, 0, 0], (1, 0))
    pallas_params = (w1k, b1.reshape(1, hidc), w2k, b2.reshape(1, hidc),
                     w3k, b3.reshape(1, ouc))
    ref_params = (w1f, b1, w2f, b2, w3f, b3)
    return pallas_params, ref_params


# ------------------------- pure-JAX reference (for verification) -------------
def ref_forward(x, ref_params, mxu_dtype=jnp.float32):
    """With mxu_dtype=bfloat16 this mirrors the kernel's MXU operand precision
    (f32 accumulation, bias, SiLU and pooling); with float32 it is the exact
    original-module semantics."""
    w1f, b1, w2f, b2, w3f, b3 = ref_params

    def conv_bn_silu(v, w, b, stride, pad):
        y = lax.conv_general_dilated(
            v.astype(mxu_dtype), w.astype(mxu_dtype), (stride, stride),
            ((pad, pad), (pad, pad)),
            dimension_numbers=('NCHW', 'OIHW', 'NCHW'),
            preferred_element_type=jnp.float32)
        return _silu(y + b[None, :, None, None])

    y1 = conv_bn_silu(x, w1f, b1, 2, 1)
    sobel = jnp.zeros_like(y1)          # exact PyTorch semantics (see header)
    yp = jnp.pad(y1, ((0, 0), (0, 0), (0, 1), (0, 1)))
    pool = lax.reduce_window(yp, -jnp.inf, lax.max, (1, 1, 2, 2),
                             (1, 1, 1, 1), 'VALID')
    cat = jnp.concatenate([sobel, pool], axis=1)
    y2 = conv_bn_silu(cat, w2f, b2, 2, 1)
    return conv_bn_silu(y2, w3f, b3, 1, 0)


if __name__ == "__main__":
    B, inc, H, W = 2, 4, 16, 16
    hidc, ouc = 8, 16

    key = jax.random.PRNGKey(0)
    kx, kp = jax.random.split(key)
    x = jax.random.normal(kx, (B, inc, H, W), jnp.float32)

    pallas_params, ref_params = make_params(inc, hidc, ouc, kp)

    out = jax.block_until_ready(eiestem_pallas(x, pallas_params))

    # Reference matched to the kernel's bf16-MXU numerics (tight check) and the
    # original full-f32 module semantics (loose sanity check).
    ref_bf16 = jax.block_until_ready(ref_forward(x, ref_params, jnp.bfloat16))
    ref_f32 = jax.block_until_ready(ref_forward(x, ref_params, jnp.float32))

    assert out.shape == (B, ouc, H // 4, W // 4), out.shape
    err_matched = float(jnp.max(jnp.abs(out - ref_bf16)))
    err_f32 = float(jnp.max(jnp.abs(out - ref_f32)))
    assert jnp.allclose(out, ref_bf16, rtol=1e-2, atol=1e-2), (err_matched, err_f32)
    assert jnp.allclose(out, ref_f32, rtol=5e-2, atol=2.5e-1), (err_matched, err_f32)

    print("KERNEL_OK")
</pallas_src>

<mosaic_0001>
module attributes {stable_mosaic.version = 11 : i64} {
  func.func @_eiestem_kernel(%arg0: i32, %arg1: memref<2x64x36xbf16, #tpu.memory_space<vmem>>, %arg2: memref<36x8xbf16, #tpu.memory_space<vmem>>, %arg3: memref<1x8xf32, #tpu.memory_space<vmem>>, %arg4: memref<72x8xbf16, #tpu.memory_space<vmem>>, %arg5: memref<1x8xf32, #tpu.memory_space<vmem>>, %arg6: memref<8x128xbf16, #tpu.memory_space<vmem>>, %arg7: memref<1x128xf32, #tpu.memory_space<vmem>>, %arg8: memref<2x16x128xf32, #tpu.memory_space<vmem>>, %arg9: memref<2x10x10x8xf32, #tpu.memory_space<vmem>>) attributes {dimension_semantics = [#tpu.dimension_semantics<parallel>], iteration_bounds = array<i64: 1>, scalar_prefetch = 0 : i64, scratch_operands = 1 : i64, tpu.core_type = #tpu.core_type<tc>, window_params = [{transform_indices = @transform_0, window_bounds = array<i64: 2, 64, 36>}, {pipeline_mode = #tpu.pipeline_mode<synchronous>, transform_indices = @transform_1, window_bounds = array<i64: 36, 8>}, {pipeline_mode = #tpu.pipeline_mode<synchronous>, transform_indices = @transform_2, window_bounds = array<i64: 1, 8>}, {pipeline_mode = #tpu.pipeline_mode<synchronous>, transform_indices = @transform_3, window_bounds = array<i64: 72, 8>}, {pipeline_mode = #tpu.pipeline_mode<synchronous>, transform_indices = @transform_4, window_bounds = array<i64: 1, 8>}, {pipeline_mode = #tpu.pipeline_mode<synchronous>, transform_indices = @transform_5, window_bounds = array<i64: 8, 128>}, {pipeline_mode = #tpu.pipeline_mode<synchronous>, transform_indices = @transform_6, window_bounds = array<i64: 1, 128>}, {transform_indices = @transform_7, window_bounds = array<i64: 2, 16, 128>}]} {
    %c0 = arith.constant 0 : index
    %c0_0 = arith.constant 0 : index
    %c0_1 = arith.constant 0 : index
    %0 = vector.load %arg1[%c0, %c0_0, %c0_1] : memref<2x64x36xbf16, #tpu.memory_space<vmem>>, vector<2x64x36xbf16>
    %1 = vector.shape_cast %0 : vector<2x64x36xbf16> to vector<128x36xbf16>
    %c0_2 = arith.constant 0 : index
    %c0_3 = arith.constant 0 : index
    %2 = vector.load %arg2[%c0_2, %c0_3] : memref<36x8xbf16, #tpu.memory_space<vmem>>, vector<36x8xbf16>
    %cst = arith.constant dense<0.000000e+00> : vector<128x8xf32>
    %3 = tpu.matmul %1, %2, %cst {dimension_numbers = #tpu.dot_dimension_numbers<[1], [0], [0], [1], [0, 0, 1, 1], [], []>} : vector<128x36xbf16>, vector<36x8xbf16>, vector<128x8xf32> -> vector<128x8xf32>
    %c0_4 = arith.constant 0 : index
    %c0_5 = arith.constant 0 : index
    %4 = vector.load %arg3[%c0_4, %c0_5] : memref<1x8xf32, #tpu.memory_space<vmem>>, vector<1x8xf32>
    %5 = vector.broadcast %4 : vector<1x8xf32> to vector<128x8xf32>
    %6 = arith.addf %3, %5 : vector<128x8xf32>
    %7 = arith.negf %6 : vector<128x8xf32>
    %8 = math.exp %7 : vector<128x8xf32>
    %cst_6 = arith.constant 1.000000e+00 : f32
    %9 = vector.broadcast %cst_6 : f32 to vector<128x8xf32>
    %10 = arith.addf %9, %8 : vector<128x8xf32>
    %11 = arith.divf %9, %10 : vector<128x8xf32>
    %12 = arith.mulf %6, %11 : vector<128x8xf32>
    %13 = vector.shape_cast %12 : vector<128x8xf32> to vector<2x8x8x8xf32>
    %cst_7 = arith.constant 0.000000e+00 : f32
    %14 = vector.broadcast %cst_7 : f32 to vector<2x1x10x8xf32>
    %c0_8 = arith.constant 0 : index
    %c0_9 = arith.constant 0 : index
    %c0_10 = arith.constant 0 : index
    %c0_11 = arith.constant 0 : index
    %15 = vector.load %arg9[%c0_8, %c0_9, %c0_10, %c0_11] : memref<2x10x10x8xf32, #tpu.memory_space<vmem>>, vector<2x1x10x8xf32>
    tpu.vector_store %arg9[%c0_8, %c0_9, %c0_10, %c0_11], %14 {strides = array<i32>} : memref<2x10x10x8xf32, #tpu.memory_space<vmem>>, vector<2x1x10x8xf32>,
    %cst_12 = arith.constant 0.000000e+00 : f32
    %16 = vector.broadcast %cst_12 : f32 to vector<2x1x10x8xf32>
    %c0_13 = arith.constant 0 : index
    %c9 = arith.constant 9 : index
    %c0_14 = arith.constant 0 : index
    %c0_15 = arith.constant 0 : index
    %17 = vector.load %arg9[%c0_13, %c9, %c0_14, %c0_15] : memref<2x10x10x8xf32, #tpu.memory_space<vmem>>, vector<2x1x10x8xf32>
    tpu.vector_store %arg9[%c0_13, %c9, %c0_14, %c0_15], %16 {strides = array<i32>} : memref<2x10x10x8xf32, #tpu.memory_space<vmem>>, vector<2x1x10x8xf32>,
    %cst_16 = arith.constant 0.000000e+00 : f32
    %18 = vector.broadcast %cst_16 : f32 to vector<2x10x1x8xf32>
    %c0_17 = arith.constant 0 : index
    %c0_18 = arith.constant 0 : index
    %c0_19 = arith.constant 0 : index
    %c0_20 = arith.constant 0 : index
    %19 = vector.load %arg9[%c0_17, %c0_18, %c0_19, %c0_20] : memref<2x10x10x8xf32, #tpu.memory_space<vmem>>, vector<2x10x1x8xf32>
    tpu.vector_store %arg9[%c0_17, %c0_18, %c0_19, %c0_20], %18 {strides = array<i32>} : memref<2x10x10x8xf32, #tpu.memory_space<vmem>>, vector<2x10x1x8xf32>,
    %cst_21 = arith.constant 0.000000e+00 : f32
    %20 = vector.broadcast %cst_21 : f32 to vector<2x10x1x8xf32>
    %c0_22 = arith.constant 0 : index
    %c0_23 = arith.constant 0 : index
    %c9_24 = arith.constant 9 : index
    %c0_25 = arith.constant 0 : index
    %21 = vector.load %arg9[%c0_22, %c0_23, %c9_24, %c0_25] : memref<2x10x10x8xf32, #tpu.memory_space<vmem>>, vector<2x10x1x8xf32>
    tpu.vector_store %arg9[%c0_22, %c0_23, %c9_24, %c0_25], %20 {strides = array<i32>} : memref<2x10x10x8xf32, #tpu.memory_space<vmem>>, vector<2x10x1x8xf32>,
    %c0_26 = arith.constant 0 : index
    %c1 = arith.constant 1 : index
    %c1_27 = arith.constant 1 : index
    %c0_28 = arith.constant 0 : index
    %22 = vector.load %arg9[%c0_26, %c1, %c1_27, %c0_28] : memref<2x10x10x8xf32, #tpu.memory_space<vmem>>, vector<2x8x8x8xf32>
    tpu.vector_store %arg9[%c0_26, %c1, %c1_27, %c0_28], %13 {strides = array<i32>} : memref<2x10x10x8xf32, #tpu.memory_space<vmem>>, vector<2x8x8x8xf32>,
    %c0_29 = arith.constant 0 : index
    %c1_30 = arith.constant 1 : index
    %c1_31 = arith.constant 1 : index
    %c0_32 = arith.constant 0 : index
    %23 = vector.load %arg9[%c0_29, %c1_30, %c1_31, %c0_32] : memref<2x10x10x8xf32, #tpu.memory_space<vmem>>, vector<2x8x8x8xf32>
    %c0_33 = arith.constant 0 : index
    %c1_34 = arith.constant 1 : index
    %c2 = arith.constant 2 : index
    %c0_35 = arith.constant 0 : index
    %24 = vector.load %arg9[%c0_33, %c1_34, %c2, %c0_35] : memref<2x10x10x8xf32, #tpu.memory_space<vmem>>, vector<2x8x8x8xf32>
    %c0_36 = arith.constant 0 : index
    %c2_37 = arith.constant 2 : index
    %c1_38 = arith.constant 1 : index
    %c0_39 = arith.constant 0 : index
    %25 = vector.load %arg9[%c0_36, %c2_37, %c1_38, %c0_39] : memref<2x10x10x8xf32, #tpu.memory_space<vmem>>, vector<2x8x8x8xf32>
    %c0_40 = arith.constant 0 : index
    %c2_41 = arith.constant 2 : index
    %c2_42 = arith.constant 2 : index
    %c0_43 = arith.constant 0 : index
    %26 = vector.load %arg9[%c0_40, %c2_41, %c2_42, %c0_43] : memref<2x10x10x8xf32, #tpu.memory_space<vmem>>, vector<2x8x8x8xf32>
    %27 = arith.maximumf %23, %24 : vector<2x8x8x8xf32>
    %28 = arith.maximumf %25, %26 : vector<2x8x8x8xf32>
    %29 = arith.maximumf %27, %28 : vector<2x8x8x8xf32>
    %c0_44 = arith.constant 0 : index
    %c1_45 = arith.constant 1 : index
    %c1_46 = arith.constant 1 : index
    %c0_47 = arith.constant 0 : index
    %30 = vector.load %arg9[%c0_44, %c1_45, %c1_46, %c0_47] : memref<2x10x10x8xf32, #tpu.memory_space<vmem>>, vector<2x8x8x8xf32>
    tpu.vector_store %arg9[%c0_44, %c1_45, %c1_46, %c0_47], %29 {strides = array<i32>} : memref<2x10x10x8xf32, #tpu.memory_space<vmem>>, vector<2x8x8x8xf32>,
    %c0_48 = arith.constant 0 : index
    %c0_49 = arith.constant 0 : index
    %c0_50 = arith.constant 0 : index
    %c0_51 = arith.constant 0 : index
    %31 = tpu.strided_load %arg9[%c0_48, %c0_49, %c0_50, %c0_51] {strides = array<i32: 1, 2, 2, 1>} : memref<2x10x10x8xf32, #tpu.memory_space<vmem>>, vector<2x4x4x8xf32>
    %32 = vector.shape_cast %31 : vector<2x4x4x8xf32> to vector<32x8xf32>
    %c0_52 = arith.constant 0 : index
    %c0_53 = arith.constant 0 : index
    %c1_54 = arith.constant 1 : index
    %c0_55 = arith.constant 0 : index
    %33 = tpu.strided_load %arg9[%c0_52, %c0_53, %c1_54, %c0_55] {strides = array<i32: 1, 2, 2, 1>} : memref<2x10x10x8xf32, #tpu.memory_space<vmem>>, vector<2x4x4x8xf32>
    %34 = vector.shape_cast %33 : vector<2x4x4x8xf32> to vector<32x8xf32>
    %c0_56 = arith.constant 0 : index
    %c0_57 = arith.constant 0 : index
    %c2_58 = arith.constant 2 : index
    %c0_59 = arith.constant 0 : index
    %35 = tpu.strided_load %arg9[%c0_56, %c0_57, %c2_58, %c0_59] {strides = array<i32: 1, 2, 2, 1>} : memref<2x10x10x8xf32, #tpu.memory_space<vmem>>, vector<2x4x4x8xf32>
    %36 = vector.shape_cast %35 : vector<2x4x4x8xf32> to vector<32x8xf32>
    %c0_60 = arith.constant 0 : index
    %c1_61 = arith.constant 1 : index
    %c0_62 = arith.constant 0 : index
    %c0_63 = arith.constant 0 : index
    %37 = tpu.strided_load %arg9[%c0_60, %c1_61, %c0_62, %c0_63] {strides = array<i32: 1, 2, 2, 1>} : memref<2x10x10x8xf32, #tpu.memory_space<vmem>>, vector<2x4x4x8xf32>
    %38 = vector.shape_cast %37 : vector<2x4x4x8xf32> to vector<32x8xf32>
    %c0_64 = arith.constant 0 : index
    %c1_65 = arith.constant 1 : index
    %c1_66 = arith.constant 1 : index
    %c0_67 = arith.constant 0 : index
    %39 = tpu.strided_load %arg9[%c0_64, %c1_65, %c1_66, %c0_67] {strides = array<i32: 1, 2, 2, 1>} : memref<2x10x10x8xf32, #tpu.memory_space<vmem>>, vector<2x4x4x8xf32>
    %40 = vector.shape_cast %39 : vector<2x4x4x8xf32> to vector<32x8xf32>
    %c0_68 = arith.constant 0 : index
    %c1_69 = arith.constant 1 : index
    %c2_70 = arith.constant 2 : index
    %c0_71 = arith.constant 0 : index
    %41 = tpu.strided_load %arg9[%c0_68, %c1_69, %c2_70, %c0_71] {strides = array<i32: 1, 2, 2, 1>} : memref<2x10x10x8xf32, #tpu.memory_space<vmem>>, vector<2x4x4x8xf32>
    %42 = vector.shape_cast %41 : vector<2x4x4x8xf32> to vector<32x8xf32>
    %c0_72 = arith.constant 0 : index
    %c2_73 = arith.constant 2 : index
    %c0_74 = arith.constant 0 : index
    %c0_75 = arith.constant 0 : index
    %43 = tpu.strided_load %arg9[%c0_72, %c2_73, %c0_74, %c0_75] {strides = array<i32: 1, 2, 2, 1>} : memref<2x10x10x8xf32, #tpu.memory_space<vmem>>, vector<2x4x4x8xf32>
    %44 = vector.shape_cast %43 : vector<2x4x4x8xf32> to vector<32x8xf32>
    %c0_76 = arith.constant 0 : index
    %c2_77 = arith.constant 2 : index
    %c1_78 = arith.constant 1 : index
    %c0_79 = arith.constant 0 : index
    %45 = tpu.strided_load %arg9[%c0_76, %c2_77, %c1_78, %c0_79] {strides = array<i32: 1, 2, 2, 1>} : memref<2x10x10x8xf32, #tpu.memory_space<vmem>>, vector<2x4x4x8xf32>
    %46 = vector.shape_cast %45 : vector<2x4x4x8xf32> to vector<32x8xf32>
    %c0_80 = arith.constant 0 : index
    %c2_81 = arith.constant 2 : index
    %c2_82 = arith.constant 2 : index
    %c0_83 = arith.constant 0 : index
    %47 = tpu.strided_load %arg9[%c0_80, %c2_81, %c2_82, %c0_83] {strides = array<i32: 1, 2, 2, 1>} : memref<2x10x10x8xf32, #tpu.memory_space<vmem>>, vector<2x4x4x8xf32>
    %48 = vector.shape_cast %47 : vector<2x4x4x8xf32> to vector<32x8xf32>
    %49 = tpu.concatenate %32, %34, %36, %38, %40, %42, %44, %46, %48 in 1 : vector<32x8xf32>, vector<32x8xf32>, vector<32x8xf32>, vector<32x8xf32>, vector<32x8xf32>, vector<32x8xf32>, vector<32x8xf32>, vector<32x8xf32>, vector<32x8xf32> -> vector<32x72xf32>
    %50 = arith.truncf %49 : vector<32x72xf32> to vector<32x72xbf16>
    %c0_84 = arith.constant 0 : index
    %c0_85 = arith.constant 0 : index
    %51 = vector.load %arg4[%c0_84, %c0_85] : memref<72x8xbf16, #tpu.memory_space<vmem>>, vector<72x8xbf16>
    %cst_86 = arith.constant dense<0.000000e+00> : vector<32x8xf32>
    %52 = tpu.matmul %50, %51, %cst_86 {dimension_numbers = #tpu.dot_dimension_numbers<[1], [0], [0], [1], [0, 0, 1, 1], [], []>} : vector<32x72xbf16>, vector<72x8xbf16>, vector<32x8xf32> -> vector<32x8xf32>
    %c0_87 = arith.constant 0 : index
    %c0_88 = arith.constant 0 : index
    %53 = vector.load %arg5[%c0_87, %c0_88] : memref<1x8xf32, #tpu.memory_space<vmem>>, vector<1x8xf32>
    %54 = vector.broadcast %53 : vector<1x8xf32> to vector<32x8xf32>
    %55 = arith.addf %52, %54 : vector<32x8xf32>
    %56 = arith.negf %55 : vector<32x8xf32>
    %57 = math.exp %56 : vector<32x8xf32>
    %cst_89 = arith.constant 1.000000e+00 : f32
    %58 = vector.broadcast %cst_89 : f32 to vector<32x8xf32>
    %59 = arith.addf %58, %57 : vector<32x8xf32>
    %60 = arith.divf %58, %59 : vector<32x8xf32>
    %61 = arith.mulf %55, %60 : vector<32x8xf32>
    %62 = arith.truncf %61 : vector<32x8xf32> to vector<32x8xbf16>
    %c0_90 = arith.constant 0 : index
    %c0_91 = arith.constant 0 : index
    %63 = vector.load %arg6[%c0_90, %c0_91] : memref<8x128xbf16, #tpu.memory_space<vmem>>, vector<8x128xbf16>
    %cst_92 = arith.constant dense<0.000000e+00> : vector<32x128xf32>
    %64 = tpu.matmul %62, %63, %cst_92 {dimension_numbers = #tpu.dot_dimension_numbers<[1], [0], [0], [1], [0, 0, 1, 1], [], []>} : vector<32x8xbf16>, vector<8x128xbf16>, vector<32x128xf32> -> vector<32x128xf32>
    %c0_93 = arith.constant 0 : index
    %c0_94 = arith.constant 0 : index
    %65 = vector.load %arg7[%c0_93, %c0_94] : memref<1x128xf32, #tpu.memory_space<vmem>>, vector<1x128xf32>
    %66 = vector.broadcast %65 : vector<1x128xf32> to vector<32x128xf32>
    %67 = arith.addf %64, %66 : vector<32x128xf32>
    %68 = arith.negf %67 : vector<32x128xf32>
    %69 = math.exp %68 : vector<32x128xf32>
    %cst_95 = arith.constant 1.000000e+00 : f32
    %70 = vector.broadcast %cst_95 : f32 to vector<32x128xf32>
    %71 = arith.addf %70, %69 : vector<32x128xf32>
    %72 = arith.divf %70, %71 : vector<32x128xf32>
    %73 = arith.mulf %67, %72 : vector<32x128xf32>
    %74 = vector.shape_cast %73 : vector<32x128xf32> to vector<2x16x128xf32>
    %c0_96 = arith.constant 0 : index
    %c0_97 = arith.constant 0 : index
    %c0_98 = arith.constant 0 : index
    %75 = vector.load %arg8[%c0_96, %c0_97, %c0_98] : memref<2x16x128xf32, #tpu.memory_space<vmem>>, vector<2x16x128xf32>
    tpu.vector_store %arg8[%c0_96, %c0_97, %c0_98], %74 {strides = array<i32>} : memref<2x16x128xf32, #tpu.memory_space<vmem>>, vector<2x16x128xf32>,
    return
  }
  func.func @transform_0(%arg0: i32) -> (i32, i32, i32) {
    %c0_i32 = arith.constant 0 : i32
    %c0_i32_0 = arith.constant 0 : i32
    %c0_i32_1 = arith.constant 0 : i32
    return %arg0, %c0_i32, %c0_i32_0 : i32, i32, i32
  }
  func.func @transform_1(%arg0: i32) -> (i32, i32) {
    %c0_i32 = arith.constant 0 : i32
    %c0_i32_0 = arith.constant 0 : i32
    %c0_i32_1 = arith.constant 0 : i32
    return %c0_i32, %c0_i32_0 : i32, i32
  }
  func.func @transform_2(%arg0: i32) -> (i32, i32) {
    %c0_i32 = arith.constant 0 : i32
    %c0_i32_0 = arith.constant 0 : i32
    %c0_i32_1 = arith.constant 0 : i32
    return %c0_i32, %c0_i32_0 : i32, i32
  }
  func.func @transform_3(%arg0: i32) -> (i32, i32) {
    %c0_i32 = arith.constant 0 : i32
    %c0_i32_0 = arith.constant 0 : i32
    %c0_i32_1 = arith.constant 0 : i32
    return %c0_i32, %c0_i32_0 : i32, i32
  }
  func.func @transform_4(%arg0: i32) -> (i32, i32) {
    %c0_i32 = arith.constant 0 : i32
    %c0_i32_0 = arith.constant 0 : i32
    %c0_i32_1 = arith.constant 0 : i32
    return %c0_i32, %c0_i32_0 : i32, i32
  }
  func.func @transform_5(%arg0: i32) -> (i32, i32) {
    %c0_i32 = arith.constant 0 : i32
    %c0_i32_0 = arith.constant 0 : i32
    %c0_i32_1 = arith.constant 0 : i32
    return %c0_i32, %c0_i32_0 : i32, i32
  }
  func.func @transform_6(%arg0: i32) -> (i32, i32) {
    %c0_i32 = arith.constant 0 : i32
    %c0_i32_0 = arith.constant 0 : i32
    %c0_i32_1 = arith.constant 0 : i32
    return %c0_i32, %c0_i32_0 : i32, i32
  }
  func.func @transform_7(%arg0: i32) -> (i32, i32, i32) {
    %c0_i32 = arith.constant 0 : i32
    %c0_i32_0 = arith.constant 0 : i32
    %c0_i32_1 = arith.constant 0 : i32
    return %arg0, %c0_i32, %c0_i32_0 : i32, i32, i32
  }
}

</mosaic_0001>

<llo_original>
// kernel: tpu_custom_call.1
$region0: #{tpu_custom_call.1}
  #allocation0 [shape = 'u32[]', space=smem, size = 0x4, offset = 0x4, fixed_abs, tag = 'smem constant byte address 0x4 - core index']
  #allocation1 [shape = 'u32[72,128]{1,0:T(1,128)}', space=vmem, size = 0x9000, scoped, tag = 'internal scratch']
  #allocation2 [shape = 'f32[2,10,10,8]{3,2,1,0:T(8,128)}', space=vmem, size = 0x28000, scoped, tag = 'scratch operand']
  %s0 = inlined_call_operand.vmem [shape: bf16[2,64,36], index: 0, kind: input, shape index: {}]
  %s1 = inlined_call_operand.vmem [shape: bf16[36,8], index: 1, kind: input, shape index: {}]
  %s2 = inlined_call_operand.vmem [shape: f32[1,8], index: 2, kind: input, shape index: {}]
  %s3 = inlined_call_operand.vmem [shape: bf16[72,8], index: 3, kind: input, shape index: {}]
  %s4 = inlined_call_operand.vmem [shape: f32[1,8], index: 4, kind: input, shape index: {}]
  %s5 = inlined_call_operand.vmem [shape: bf16[8,128], index: 5, kind: input, shape index: {}]
  %s6 = inlined_call_operand.vmem [shape: f32[1,128], index: 6, kind: input, shape index: {}]
  %s7 = inlined_call_operand.hbm [shape: f32[2,16,128], index: 7, kind: output, shape index: {}]
  %s8 = sld [smem:[#allocation0]]
  $region38: #{tpu_custom_call.1} parent=0
    _
  %s10 = ssub.s32 1, %s8
  %s11 = scalar_select 0, %s10, %s8
  $region1: #{tpu_custom_call.1} parent=0
    #allocation3 [shape = 'u8[16384]{0}', space=vmem, size = 0x4000, scoped, tag = 'output window, operand 0, single buffered']
    #allocation4 [shape = 's32[1]{0}', space=sflag, size = 0x4, scoped, tag = 'scoped memory for tpu_custom_call.1']
    %12 = vsyncpa [#allocation4], 0
    // Predicated region
    $region2: #{tpu_custom_call.1} parent=1 // pred_check
      _
    $region3: #{tpu_custom_call.1} parent=1 // pred_check_branch
      %14 = sbr.rel (0) target = $region5
    $region4: #{tpu_custom_call.1} parent=1 // pred_region
      _
    $region5: #{tpu_custom_call.1} parent=1 // pred_fallthru
      _
    // Predicated region
    $region6: #{tpu_custom_call.1} parent=1 // pred_check
      _
    $region7: #{tpu_custom_call.1} parent=1 // pred_check_branch
      %16 = sbr.rel (0) target = $region9
    $region8: #{tpu_custom_call.1} parent=1 // pred_region
      _
    $region9: #{tpu_custom_call.1} parent=1 // pred_fallthru
      _
    // Predicated region
    $region10: #{tpu_custom_call.1} parent=1 // pred_check
      _
    $region11: #{tpu_custom_call.1} parent=1 // pred_check_branch
      %18 = sbr.rel (0) target = $region13
    $region12: #{tpu_custom_call.1} parent=1 // pred_region
      _
    $region13: #{tpu_custom_call.1} parent=1 // pred_fallthru
      _
    // Predicated region
    $region14: #{tpu_custom_call.1} parent=1 // pred_check
      _
    $region15: #{tpu_custom_call.1} parent=1 // pred_check_branch
      %20 = sbr.rel (0) target = $region17
    $region16: #{tpu_custom_call.1} parent=1 // pred_region
      _
    $region17: #{tpu_custom_call.1} parent=1 // pred_fallthru
      _
    // Predicated region
    $region18: #{tpu_custom_call.1} parent=1 // pred_check
      _
    $region19: #{tpu_custom_call.1} parent=1 // pred_check_branch
      %22 = sbr.rel (0) target = $region21
    $region20: #{tpu_custom_call.1} parent=1 // pred_region
      _
    $region21: #{tpu_custom_call.1} parent=1 // pred_fallthru
      _
    // Predicated region
    $region22: #{tpu_custom_call.1} parent=1 // pred_check
      _
    $region23: #{tpu_custom_call.1} parent=1 // pred_check_branch
      %24 = sbr.rel (0) target = $region25
    $region24: #{tpu_custom_call.1} parent=1 // pred_region
      _
    $region25: #{tpu_custom_call.1} parent=1 // pred_fallthru
      _
    // Predicated region
    $region26: #{tpu_custom_call.1} parent=1 // pred_check
      _
    $region27: #{tpu_custom_call.1} parent=1 // pred_check_branch
      %26 = sbr.rel (0) target = $region29
    $region28: #{tpu_custom_call.1} parent=1 // pred_region
      _
    $region29: #{tpu_custom_call.1} parent=1 // pred_fallthru
      _
    %v28 = vld [vmem:[%s0] sm:$0xf]
    %v29 = vld [vmem:[%s0 + $0x4] sm:$0xf]
    %v30 = vld [vmem:[%s0 + $0x8] sm:$0xf]
    %v31 = vld [vmem:[%s0 + $0xc] sm:$0xf]
    %v32 = vld [vmem:[%s0 + $0x10] sm:$0xf]
    %v33 = vld [vmem:[%s0 + $0x14] sm:$0xf]
    %v34 = vld [vmem:[%s0 + $0x18] sm:$0xf]
    %v35 = vld [vmem:[%s0 + $0x1c] sm:$0xf]
    %v36 = vld [vmem:[%s0 + $0x20] sm:$0xf]
    %v37 = vld [vmem:[%s0 + $0x24] sm:$0xf]
    %v38 = vld [vmem:[%s0 + $0x28] sm:$0xf]
    %v39 = vld [vmem:[%s0 + $0x2c] sm:$0xf]
    %v40 = vld [vmem:[%s0 + $0x30] sm:$0xf]
    %v41 = vld [vmem:[%s0 + $0x34] sm:$0xf]
    %v42 = vld [vmem:[%s0 + $0x38] sm:$0xf]
    %v43 = vld [vmem:[%s0 + $0x3c] sm:$0xf]
    %v44 = vld [vmem:[%s1] sm:$0xf]
    %v45 = vld [vmem:[%s1 + $0x4] sm:$0xf]
    %v46 = vld [vmem:[%s1 + $0x8] sm:$0xf]
    %v47 = vld [vmem:[%s1 + $0xc] sm:$0xf]
    %v48 = vld [vmem:[%s1 + $0x10] sm:$0x3]
    %v49 = vld [vmem:[%s2] sm:$0x1]
    %v51 = vperm.slane %v49, 0
    %v69 = vunpack.c.l.b16 %v28
    %v70 = vunpack.c.l.b16 %v29
    %v71 = vunpack.c.l.b16 %v30
    %v72 = vunpack.c.l.b16 %v31
    %v73 = vunpack.c.l.b16 %v32
    %v74 = vunpack.c.l.b16 %v33
    %v75 = vunpack.c.l.b16 %v34
    %v76 = vunpack.c.l.b16 %v35
    %v77 = vunpack.c.l.b16 %v36
    %v78 = vunpack.c.l.b16 %v37
    %v79 = vunpack.c.l.b16 %v38
    %v80 = vunpack.c.l.b16 %v39
    %v81 = vunpack.c.l.b16 %v40
    %v82 = vunpack.c.l.b16 %v41
    %v83 = vunpack.c.l.b16 %v42
    %v84 = vunpack.c.l.b16 %v43
    %v85 = vpack.c.b16 %v70, %v69
    %v86 = vpack.c.b16 %v72, %v71
    %v87 = vpack.c.b16 %v74, %v73
    %v88 = vpack.c.b16 %v76, %v75
    %v89 = vpack.c.b16 %v78, %v77
    %v90 = vpack.c.b16 %v80, %v79
    %v91 = vpack.c.b16 %v82, %v81
    %v92 = vpack.c.b16 %v84, %v83
    %v98 = vunpack.c.l.b16 %v44
    %v99 = vunpack.c.l.b16 %v45
    %v100 = vunpack.c.l.b16 %v46
    %v101 = vunpack.c.l.b16 %v47
    %v102 = vunpack.c.l.b16 %v48
    %v103 = vpack.c.b16 %v99, %v98
    %v104 = vpack.c.b16 %v101, %v100
    %v105 = vpack.c.b16 %v102, %v102
    %vm108 = vcmask 293888
    %v110 = vsel %vm108, %v85, 0
    %v113 = vsel %vm108, %v86, 0
    %v116 = vsel %vm108, %v87, 0
    %v119 = vsel %vm108, %v88, 0
    %v122 = vsel %vm108, %v89, 0
    %v125 = vsel %vm108, %v90, 0
    %v128 = vsel %vm108, %v91, 0
    %v131 = vsel %vm108, %v92, 0
    %vm133 = vcmask 1041408
    %v135 = vsel %vm133, %v105, 0
    %137 = vmatpush.bf16.msra.mxu0 0
    %138 = vmatpush.bf16.msra.mxu0 0
    %139 = vmatpush.bf16.msra.mxu0 0
    %140 = vmatpush.bf16.msra.mxu0 0
    %141 = vmatpush.bf16.msra.mxu0 0
    %142 = vmatpush.bf16.msra.mxu0 %v135
    %143 = vmatpush.bf16.msra.mxu0 %v104
    %144 = vmatpush.bf16.msra.mxu0 %v103
    %145 = vmatmul.bf16.gmra.mxu0 %v110
    %v146 = vpop.f32.mrf.mxu0
    %v147 = vadd.f32 %v51, %v146
    %v148 = vpop.f32.mrf.mxu0
    %v149 = vadd.f32 %v51, %v148
    %150 = vmatmul.bf16.gmra.mxu0 %v113
    %v151 = vpop.f32.mrf.mxu0
    %v152 = vadd.f32 %v51, %v151
    %v153 = vpop.f32.mrf.mxu0
    %v154 = vadd.f32 %v51, %v153
    %155 = vmatmul.bf16.gmra.mxu0 %v116
    %v156 = vpop.f32.mrf.mxu0
    %v157 = vadd.f32 %v51, %v156
    %v158 = vpop.f32.mrf.mxu0
    %v159 = vadd.f32 %v51, %v158
    %160 = vmatmul.bf16.gmra.mxu0 %v119
    %v161 = vpop.f32.mrf.mxu0
    %v162 = vadd.f32 %v51, %v161
    %v163 = vpop.f32.mrf.mxu0
    %v164 = vadd.f32 %v51, %v163
    %165 = vmatmul.bf16.gmra.mxu0 %v122
    %v166 = vpop.f32.mrf.mxu0
    %v167 = vadd.f32 %v51, %v166
    %v168 = vpop.f32.mrf.mxu0
    %v169 = vadd.f32 %v51, %v168
    %170 = vmatmul.bf16.gmra.mxu0 %v125
    %v171 = vpop.f32.mrf.mxu0
    %v172 = vadd.f32 %v51, %v171
    %v173 = vpop.f32.mrf.mxu0
    %v174 = vadd.f32 %v51, %v173
    %175 = vmatmul.bf16.gmra.mxu0 %v128
    %v176 = vpop.f32.mrf.mxu0
    %v177 = vadd.f32 %v51, %v176
    %v178 = vpop.f32.mrf.mxu0
    %v179 = vadd.f32 %v51, %v178
    %180 = vmatmul.bf16.gmra.mxu0 %v131
    %v181 = vpop.f32.mrf.mxu0
    %v182 = vadd.f32 %v51, %v181
    %v183 = vpop.f32.mrf.mxu0
    %v184 = vadd.f32 %v51, %v183
    %185 = vdwg.mxu0
    %v186 = vxor.u32 %v147, 2147483648
    %v187 = vxor.u32 %v149, 2147483648
    %v188 = vxor.u32 %v152, 2147483648
    %v189 = vxor.u32 %v154, 2147483648
    %v190 = vxor.u32 %v157, 2147483648
    %v191 = vxor.u32 %v159, 2147483648
    %v192 = vxor.u32 %v162, 2147483648
    %v193 = vxor.u32 %v164, 2147483648
    %v194 = vxor.u32 %v167, 2147483648
    %v195 = vxor.u32 %v169, 2147483648
    %v196 = vxor.u32 %v172, 2147483648
    %v197 = vxor.u32 %v174, 2147483648
    %v198 = vxor.u32 %v177, 2147483648
    %v199 = vxor.u32 %v179, 2147483648
    %v200 = vxor.u32 %v182, 2147483648
    %v201 = vxor.u32 %v184, 2147483648
    %v202 = vmul.f32 %v186, 1.442695
    %v203 = vpow.pop %v202
    %v204 = vmul.f32 %v187, 1.442695
    %v205 = vpow.pop %v204
    %v206 = vmul.f32 %v188, 1.442695
    %v207 = vpow.pop %v206
    %v208 = vmul.f32 %v189, 1.442695
    %v209 = vpow.pop %v208
    %v210 = vmul.f32 %v190, 1.442695
    %v211 = vpow.pop %v210
    %v212 = vmul.f32 %v191, 1.442695
    %v213 = vpow.pop %v212
    %v214 = vmul.f32 %v192, 1.442695
    %v215 = vpow.pop %v214
    %v216 = vmul.f32 %v193, 1.442695
    %v217 = vpow.pop %v216
    %v218 = vmul.f32 %v194, 1.442695
    %v219 = vpow.pop %v218
    %v220 = vmul.f32 %v195, 1.442695
    %v221 = vpow.pop %v220
    %v222 = vmul.f32 %v196, 1.442695
    %v223 = vpow.pop %v222
    %v224 = vmul.f32 %v197, 1.442695
    %v225 = vpow.pop %v224
    %v226 = vmul.f32 %v198, 1.442695
    %v227 = vpow.pop %v226
    %v228 = vmul.f32 %v199, 1.442695
    %v229 = vpow.pop %v228
    %v230 = vmul.f32 %v200, 1.442695
    %v231 = vpow.pop %v230
    %v232 = vmul.f32 %v201, 1.442695
    %v233 = vpow.pop %v232
    %v234 = vadd.f32 %v203, 1.0
    %v235 = vadd.f32 %v205, 1.0
    %v236 = vadd.f32 %v207, 1.0
    %v237 = vadd.f32 %v209, 1.0
    %v238 = vadd.f32 %v211, 1.0
    %v239 = vadd.f32 %v213, 1.0
    %v240 = vadd.f32 %v215, 1.0
    %v241 = vadd.f32 %v217, 1.0
    %v242 = vadd.f32 %v219, 1.0
    %v243 = vadd.f32 %v221, 1.0
    %v244 = vadd.f32 %v223, 1.0
    %v245 = vadd.f32 %v225, 1.0
    %v246 = vadd.f32 %v227, 1.0
    %v247 = vadd.f32 %v229, 1.0
    %v248 = vadd.f32 %v231, 1.0
    %v249 = vadd.f32 %v233, 1.0
    %v250 = vrcp.pop %v234
    %v251 = vmul.f32 %v234, %v250
    %v252 = vsub.f32 1.0, %v251
    %v253 = vmul.f32 %v250, %v252
    %v254 = vadd.f32 %v250, %v253
    %vm255 = vweird.f32 %v234
    %vm256 = vweird.f32 %v250
    %vm257 = vmor %vm255, %vm256
    %v258 = vsel %vm257, %v250, %v254
    %v259 = vand.u32 2147483647, %v234
    %vm260 = vcmp.eq.f32.partialorder %v259, 8.507059e+37
    %v261 = vand.u32 %v234, 2147483648
    %v262 = vor.u32 1.1754944e-38, %v261
    %v263 = vsel %vm260, %v262, %v258
    %v264 = vmul.f32 1.0, %v263
    %v265 = vrcp.pop %v235
    %v266 = vmul.f32 %v235, %v265
    %v267 = vsub.f32 1.0, %v266
    %v268 = vmul.f32 %v265, %v267
    %v269 = vadd.f32 %v265, %v268
    %vm270 = vweird.f32 %v235
    %vm271 = vweird.f32 %v265
    %vm272 = vmor %vm270, %vm271
    %v273 = vsel %vm272, %v265, %v269
    %v274 = vand.u32 2147483647, %v235
    %vm275 = vcmp.eq.f32.partialorder %v274, 8.507059e+37
    %v276 = vand.u32 %v235, 2147483648
    %v277 = vor.u32 1.1754944e-38, %v276
    %v278 = vsel %vm275, %v277, %v273
    %v279 = vmul.f32 1.0, %v278
    %v280 = vrcp.pop %v236
    %v281 = vmul.f32 %v236, %v280
    %v282 = vsub.f32 1.0, %v281
    %v283 = vmul.f32 %v280, %v282
    %v284 = vadd.f32 %v280, %v283
    %vm285 = vweird.f32 %v236
    %vm286 = vweird.f32 %v280
    %vm287 = vmor %vm285, %vm286
    %v288 = vsel %vm287, %v280, %v284
    %v289 = vand.u32 2147483647, %v236
    %vm290 = vcmp.eq.f32.partialorder %v289, 8.507059e+37
    %v291 = vand.u32 %v236, 2147483648
    %v292 = vor.u32 1.1754944e-38, %v291
    %v293 = vsel %vm290, %v292, %v288
    %v294 = vmul.f32 1.0, %v293
    %v295 = vrcp.pop %v237
    %v296 = vmul.f32 %v237, %v295
    %v297 = vsub.f32 1.0, %v296
    %v298 = vmul.f32 %v295, %v297
    %v299 = vadd.f32 %v295, %v298
    %vm300 = vweird.f32 %v237
    %vm301 = vweird.f32 %v295
    %vm302 = vmor %vm300, %vm301
    %v303 = vsel %vm302, %v295, %v299
    %v304 = vand.u32 2147483647, %v237
    %vm305 = vcmp.eq.f32.partialorder %v304, 8.507059e+37
    %v306 = vand.u32 %v237, 2147483648
    %v307 = vor.u32 1.1754944e-38, %v306
    %v308 = vsel %vm305, %v307, %v303
    %v309 = vmul.f32 1.0, %v308
    %v310 = vrcp.pop %v238
    %v311 = vmul.f32 %v238, %v310
    %v312 = vsub.f32 1.0, %v311
    %v313 = vmul.f32 %v310, %v312
    %v314 = vadd.f32 %v310, %v313
    %vm315 = vweird.f32 %v238
    %vm316 = vweird.f32 %v310
    %vm317 = vmor %vm315, %vm316
    %v318 = vsel %vm317, %v310, %v314
    %v319 = vand.u32 2147483647, %v238
    %vm320 = vcmp.eq.f32.partialorder %v319, 8.507059e+37
    %v321 = vand.u32 %v238, 2147483648
    %v322 = vor.u32 1.1754944e-38, %v321
    %v323 = vsel %vm320, %v322, %v318
    %v324 = vmul.f32 1.0, %v323
    %v325 = vrcp.pop %v239
    %v326 = vmul.f32 %v239, %v325
    %v327 = vsub.f32 1.0, %v326
    %v328 = vmul.f32 %v325, %v327
    %v329 = vadd.f32 %v325, %v328
    %vm330 = vweird.f32 %v239
    %vm331 = vweird.f32 %v325
    %vm332 = vmor %vm330, %vm331
    %v333 = vsel %vm332, %v325, %v329
    %v334 = vand.u32 2147483647, %v239
    %vm335 = vcmp.eq.f32.partialorder %v334, 8.507059e+37
    %v336 = vand.u32 %v239, 2147483648
    %v337 = vor.u32 1.1754944e-38, %v336
    %v338 = vsel %vm335, %v337, %v333
    %v339 = vmul.f32 1.0, %v338
    %v340 = vrcp.pop %v240
    %v341 = vmul.f32 %v240, %v340
    %v342 = vsub.f32 1.0, %v341
    %v343 = vmul.f32 %v340, %v342
    %v344 = vadd.f32 %v340, %v343
    %vm345 = vweird.f32 %v240
    %vm346 = vweird.f32 %v340
    %vm347 = vmor %vm345, %vm346
    %v348 = vsel %vm347, %v340, %v344
    %v349 = vand.u32 2147483647, %v240
    %vm350 = vcmp.eq.f32.partialorder %v349, 8.507059e+37
    %v351 = vand.u32 %v240, 2147483648
    %v352 = vor.u32 1.1754944e-38, %v351
    %v353 = vsel %vm350, %v352, %v348
    %v354 = vmul.f32 1.0, %v353
    %v355 = vrcp.pop %v241
    %v356 = vmul.f32 %v241, %v355
    %v357 = vsub.f32 1.0, %v356
    %v358 = vmul.f32 %v355, %v357
    %v359 = vadd.f32 %v355, %v358
    %vm360 = vweird.f32 %v241
    %vm361 = vweird.f32 %v355
    %vm362 = vmor %vm360, %vm361
    %v363 = vsel %vm362, %v355, %v359
    %v364 = vand.u32 2147483647, %v241
    %vm365 = vcmp.eq.f32.partialorder %v364, 8.507059e+37
    %v366 = vand.u32 %v241, 2147483648
    %v367 = vor.u32 1.1754944e-38, %v366
    %v368 = vsel %vm365, %v367, %v363
    %v369 = vmul.f32 1.0, %v368
    %v370 = vrcp.pop %v242
    %v371 = vmul.f32 %v242, %v370
    %v372 = vsub.f32 1.0, %v371
    %v373 = vmul.f32 %v370, %v372
    %v374 = vadd.f32 %v370, %v373
    %vm375 = vweird.f32 %v242
    %vm376 = vweird.f32 %v370
    %vm377 = vmor %vm375, %vm376
    %v378 = vsel %vm377, %v370, %v374
    %v379 = vand.u32 2147483647, %v242
    %vm380 = vcmp.eq.f32.partialorder %v379, 8.507059e+37
    %v381 = vand.u32 %v242, 2147483648
    %v382 = vor.u32 1.1754944e-38, %v381
    %v383 = vsel %vm380, %v382, %v378
    %v384 = vmul.f32 1.0, %v383
    %v385 = vrcp.pop %v243
    %v386 = vmul.f32 %v243, %v385
    %v387 = vsub.f32 1.0, %v386
    %v388 = vmul.f32 %v385, %v387
    %v389 = vadd.f32 %v385, %v388
    %vm390 = vweird.f32 %v243
    %vm391 = vweird.f32 %v385
    %vm392 = vmor %vm390, %vm391
    %v393 = vsel %vm392, %v385, %v389
    %v394 = vand.u32 2147483647, %v243
    %vm395 = vcmp.eq.f32.partialorder %v394, 8.507059e+37
    %v396 = vand.u32 %v243, 2147483648
    %v397 = vor.u32 1.1754944e-38, %v396
    %v398 = vsel %vm395, %v397, %v393
    %v399 = vmul.f32 1.0, %v398
    %v400 = vrcp.pop %v244
    %v401 = vmul.f32 %v244, %v400
    %v402 = vsub.f32 1.0, %v401
    %v403 = vmul.f32 %v400, %v402
    %v404 = vadd.f32 %v400, %v403
    %vm405 = vweird.f32 %v244
    %vm406 = vweird.f32 %v400
    %vm407 = vmor %vm405, %vm406
    %v408 = vsel %vm407, %v400, %v404
    %v409 = vand.u32 2147483647, %v244
    %vm410 = vcmp.eq.f32.partialorder %v409, 8.507059e+37
    %v411 = vand.u32 %v244, 2147483648
    %v412 = vor.u32 1.1754944e-38, %v411
    %v413 = vsel %vm410, %v412, %v408
    %v414 = vmul.f32 1.0, %v413
    %v415 = vrcp.pop %v245
    %v416 = vmul.f32 %v245, %v415
    %v417 = vsub.f32 1.0, %v416
    %v418 = vmul.f32 %v415, %v417
    %v419 = vadd.f32 %v415, %v418
    %vm420 = vweird.f32 %v245
    %vm421 = vweird.f32 %v415
    %vm422 = vmor %vm420, %vm421
    %v423 = vsel %vm422, %v415, %v419
    %v424 = vand.u32 2147483647, %v245
    %vm425 = vcmp.eq.f32.partialorder %v424, 8.507059e+37
    %v426 = vand.u32 %v245, 2147483648
    %v427 = vor.u32 1.1754944e-38, %v426
    %v428 = vsel %vm425, %v427, %v423
    %v429 = vmul.f32 1.0, %v428
    %v430 = vrcp.pop %v246
    %v431 = vmul.f32 %v246, %v430
    %v432 = vsub.f32 1.0, %v431
    %v433 = vmul.f32 %v430, %v432
    %v434 = vadd.f32 %v430, %v433
    %vm435 = vweird.f32 %v246
    %vm436 = vweird.f32 %v430
    %vm437 = vmor %vm435, %vm436
    %v438 = vsel %vm437, %v430, %v434
    %v439 = vand.u32 2147483647, %v246
    %vm440 = vcmp.eq.f32.partialorder %v439, 8.507059e+37
    %v441 = vand.u32 %v246, 2147483648
    %v442 = vor.u32 1.1754944e-38, %v441
    %v443 = vsel %vm440, %v442, %v438
    %v444 = vmul.f32 1.0, %v443
    %v445 = vrcp.pop %v247
    %v446 = vmul.f32 %v247, %v445
    %v447 = vsub.f32 1.0, %v446
    %v448 = vmul.f32 %v445, %v447
    %v449 = vadd.f32 %v445, %v448
    %vm450 = vweird.f32 %v247
    %vm451 = vweird.f32 %v445
    %vm452 = vmor %vm450, %vm451
    %v453 = vsel %vm452, %v445, %v449
    %v454 = vand.u32 2147483647, %v247
    %vm455 = vcmp.eq.f32.partialorder %v454, 8.507059e+37
    %v456 = vand.u32 %v247, 2147483648
    %v457 = vor.u32 1.1754944e-38, %v456
    %v458 = vsel %vm455, %v457, %v453
    %v459 = vmul.f32 1.0, %v458
    %v460 = vrcp.pop %v248
    %v461 = vmul.f32 %v248, %v460
    %v462 = vsub.f32 1.0, %v461
    %v463 = vmul.f32 %v460, %v462
    %v464 = vadd.f32 %v460, %v463
    %vm465 = vweird.f32 %v248
    %vm466 = vweird.f32 %v460
    %vm467 = vmor %vm465, %vm466
    %v468 = vsel %vm467, %v460, %v464
    %v469 = vand.u32 2147483647, %v248
    %vm470 = vcmp.eq.f32.partialorder %v469, 8.507059e+37
    %v471 = vand.u32 %v248, 2147483648
    %v472 = vor.u32 1.1754944e-38, %v471
    %v473 = vsel %vm470, %v472, %v468
    %v474 = vmul.f32 1.0, %v473
    %v475 = vrcp.pop %v249
    %v476 = vmul.f32 %v249, %v475
    %v477 = vsub.f32 1.0, %v476
    %v478 = vmul.f32 %v475, %v477
    %v479 = vadd.f32 %v475, %v478
    %vm480 = vweird.f32 %v249
    %vm481 = vweird.f32 %v475
    %vm482 = vmor %vm480, %vm481
    %v483 = vsel %vm482, %v475, %v479
    %v484 = vand.u32 2147483647, %v249
    %vm485 = vcmp.eq.f32.partialorder %v484, 8.507059e+37
    %v486 = vand.u32 %v249, 2147483648
    %v487 = vor.u32 1.1754944e-38, %v486
    %v488 = vsel %vm485, %v487, %v483
    %v489 = vmul.f32 1.0, %v488
    %v490 = vmul.f32 %v147, %v264
    %v491 = vmul.f32 %v149, %v279
    %v492 = vmul.f32 %v152, %v294
    %v493 = vmul.f32 %v154, %v309
    %v494 = vmul.f32 %v157, %v324
    %v495 = vmul.f32 %v159, %v339
    %v496 = vmul.f32 %v162, %v354
    %v497 = vmul.f32 %v164, %v369
    %v498 = vmul.f32 %v167, %v384
    %v499 = vmul.f32 %v169, %v399
    %v500 = vmul.f32 %v172, %v414
    %v501 = vmul.f32 %v174, %v429
    %v502 = vmul.f32 %v177, %v444
    %v503 = vmul.f32 %v179, %v459
    %v504 = vmul.f32 %v182, %v474
    %v505 = vmul.f32 %v184, %v489
    %vm506 = vcmask 64512
    %507 = vst.msk [vmem:[#allocation2] sm:$0xff] %vm506, 0.0
    %vm508 = vcmask 58368
    %509 = vst.msk [vmem:[#allocation2 + $0x8] sm:$0x3] %vm508, 0.0
    %510 = vst.msk [vmem:[#allocation2 + $0xa0] sm:$0xff] %vm506, 0.0
    %511 = vst.msk [vmem:[#allocation2 + $0xa8] sm:$0x3] %vm508, 0.0
    %s512 = scalar_lea.vmem [#allocation2], 144
    %513 = vst.msk [vmem:[%s512] sm:$0xff] %vm506, 0.0
    %514 = vst.msk [vmem:[%s512 + $0x8] sm:$0x3] %vm508, 0.0
    %515 = vst.msk [vmem:[%s512 + $0xa0] sm:$0xff] %vm506, 0.0
    %516 = vst.msk [vmem:[%s512 + $0xa8] sm:$0x3] %vm508, 0.0
    %vm517 = vcmask 57344
    %518 = vst.msk [vmem:[#allocation2] sm:$0x1] %vm517, 0.0
    %519 = vst.msk [vmem:[#allocation2 + $0x10] sm:$0x1] %vm517, 0.0
    %520 = vst.msk [vmem:[#allocation2 + $0x20] sm:$0x1] %vm517, 0.0
    %521 = vst.msk [vmem:[#allocation2 + $0x30] sm:$0x1] %vm517, 0.0
    %522 = vst.msk [vmem:[#allocation2 + $0x40] sm:$0x1] %vm517, 0.0
    %523 = vst.msk [vmem:[#allocation2 + $0x50] sm:$0x1] %vm517, 0.0
    %524 = vst.msk [vmem:[#allocation2 + $0x60] sm:$0x1] %vm517, 0.0
    %525 = vst.msk [vmem:[#allocation2 + $0x70] sm:$0x1] %vm517, 0.0
    %526 = vst.msk [vmem:[#allocation2 + $0x80] sm:$0x1] %vm517, 0.0
    %527 = vst.msk [vmem:[#allocation2 + $0x90] sm:$0x1] %vm517, 0.0
    %528 = vst.msk [vmem:[#allocation2 + $0xa0] sm:$0x1] %vm517, 0.0
    %529 = vst.msk [vmem:[#allocation2 + $0xb0] sm:$0x1] %vm517, 0.0
    %530 = vst.msk [vmem:[#allocation2 + $0xc0] sm:$0x1] %vm517, 0.0
    %531 = vst.msk [vmem:[#allocation2 + $0xd0] sm:$0x1] %vm517, 0.0
    %532 = vst.msk [vmem:[#allocation2 + $0xe0] sm:$0x1] %vm517, 0.0
    %533 = vst.msk [vmem:[#allocation2 + $0xf0] sm:$0x1] %vm517, 0.0
    %534 = vst.msk [vmem:[#allocation2 + $0x100] sm:$0x1] %vm517, 0.0
    %535 = vst.msk [vmem:[#allocation2 + $0x110] sm:$0x1] %vm517, 0.0
    %536 = vst.msk [vmem:[#allocation2 + $0x120] sm:$0x1] %vm517, 0.0
    %537 = vst.msk [vmem:[#allocation2 + $0x130] sm:$0x1] %vm517, 0.0
    %538 = vst.msk [vmem:[#allocation2 + $0x9] sm:$0x1] %vm517, 0.0
    %539 = vst.msk [vmem:[#allocation2 + $0x19] sm:$0x1] %vm517, 0.0
    %540 = vst.msk [vmem:[#allocation2 + $0x29] sm:$0x1] %vm517, 0.0
    %541 = vst.msk [vmem:[#allocation2 + $0x39] sm:$0x1] %vm517, 0.0
    %542 = vst.msk [vmem:[#allocation2 + $0x49] sm:$0x1] %vm517, 0.0
    %543 = vst.msk [vmem:[#allocation2 + $0x59] sm:$0x1] %vm517, 0.0
    %544 = vst.msk [vmem:[#allocation2 + $0x69] sm:$0x1] %vm517, 0.0
    %545 = vst.msk [vmem:[#allocation2 + $0x79] sm:$0x1] %vm517, 0.0
    %546 = vst.msk [vmem:[#allocation2 + $0x89] sm:$0x1] %vm517, 0.0
    %547 = vst.msk [vmem:[#allocation2 + $0x99] sm:$0x1] %vm517, 0.0
    %548 = vst.msk [vmem:[#allocation2 + $0xa9] sm:$0x1] %vm517, 0.0
    %549 = vst.msk [vmem:[#allocation2 + $0xb9] sm:$0x1] %vm517, 0.0
    %550 = vst.msk [vmem:[#allocation2 + $0xc9] sm:$0x1] %vm517, 0.0
    %551 = vst.msk [vmem:[#allocation2 + $0xd9] sm:$0x1] %vm517, 0.0
    %552 = vst.msk [vmem:[#allocation2 + $0xe9] sm:$0x1] %vm517, 0.0
    %553 = vst.msk [vmem:[#allocation2 + $0xf9] sm:$0x1] %vm517, 0.0
    %554 = vst.msk [vmem:[#allocation2 + $0x109] sm:$0x1] %vm517, 0.0
    %555 = vst.msk [vmem:[#allocation2 + $0x119] sm:$0x1] %vm517, 0.0
    %556 = vst.msk [vmem:[#allocation2 + $0x129] sm:$0x1] %vm517, 0.0
    %557 = vst.msk [vmem:[#allocation2 + $0x139] sm:$0x1] %vm517, 0.0
    %s558 = scalar_lea.vmem [#allocation2], 16
    %559 = vst.msk [vmem:[%s558 + $0x1] sm:$0xff] %vm506, %v490
    %560 = vst.msk [vmem:[%s558 + $0x11] sm:$0xff] %vm506, %v491
    %561 = vst.msk [vmem:[%s558 + $0x21] sm:$0xff] %vm506, %v492
    %562 = vst.msk [vmem:[%s558 + $0x31] sm:$0xff] %vm506, %v493
    %563 = vst.msk [vmem:[%s558 + $0x41] sm:$0xff] %vm506, %v494
    %564 = vst.msk [vmem:[%s558 + $0x51] sm:$0xff] %vm506, %v495
    %565 = vst.msk [vmem:[%s558 + $0x61] sm:$0xff] %vm506, %v496
    %566 = vst.msk [vmem:[%s558 + $0x71] sm:$0xff] %vm506, %v497
    %567 = vst.msk [vmem:[%s558 + $0xa1] sm:$0xff] %vm506, %v498
    %568 = vst.msk [vmem:[%s558 + $0xb1] sm:$0xff] %vm506, %v499
    %569 = vst.msk [vmem:[%s558 + $0xc1] sm:$0xff] %vm506, %v500
    %570 = vst.msk [vmem:[%s558 + $0xd1] sm:$0xff] %vm506, %v501
    %571 = vst.msk [vmem:[%s558 + $0xe1] sm:$0xff] %vm506, %v502
    %572 = vst.msk [vmem:[%s558 + $0xf1] sm:$0xff] %vm506, %v503
    %573 = vst.msk [vmem:[%s558 + $0x101] sm:$0xff] %vm506, %v504
    %574 = vst.msk [vmem:[%s558 + $0x111] sm:$0xff] %vm506, %v505
    %v575 = vld [vmem:[%s558 + $0x1] sm:$0xff]
    %v576 = vld [vmem:[%s558 + $0x11] sm:$0xff]
    %v577 = vld [vmem:[%s558 + $0x21] sm:$0xff]
    %v578 = vld [vmem:[%s558 + $0x31] sm:$0xff]
    %v579 = vld [vmem:[%s558 + $0x41] sm:$0xff]
    %v580 = vld [vmem:[%s558 + $0x51] sm:$0xff]
    %v581 = vld [vmem:[%s558 + $0x61] sm:$0xff]
    %v582 = vld [vmem:[%s558 + $0x71] sm:$0xff]
    %v583 = vld [vmem:[%s558 + $0xa1] sm:$0xff]
    %v584 = vld [vmem:[%s558 + $0xb1] sm:$0xff]
    %v585 = vld [vmem:[%s558 + $0xc1] sm:$0xff]
    %v586 = vld [vmem:[%s558 + $0xd1] sm:$0xff]
    %v587 = vld [vmem:[%s558 + $0xe1] sm:$0xff]
    %v588 = vld [vmem:[%s558 + $0xf1] sm:$0xff]
    %v589 = vld [vmem:[%s558 + $0x101] sm:$0xff]
    %v590 = vld [vmem:[%s558 + $0x111] sm:$0xff]
    %v591 = vld [vmem:[%s558 + $0x2] sm:$0xff]
    %v592 = vld [vmem:[%s558 + $0x12] sm:$0xff]
    %v593 = vld [vmem:[%s558 + $0x22] sm:$0xff]
    %v594 = vld [vmem:[%s558 + $0x32] sm:$0xff]
    %v595 = vld [vmem:[%s558 + $0x42] sm:$0xff]
    %v596 = vld [vmem:[%s558 + $0x52] sm:$0xff]
    %v597 = vld [vmem:[%s558 + $0x62] sm:$0xff]
    %v598 = vld [vmem:[%s558 + $0x72] sm:$0xff]
    %v599 = vld [vmem:[%s558 + $0xa2] sm:$0xff]
    %v600 = vld [vmem:[%s558 + $0xb2] sm:$0xff]
    %v601 = vld [vmem:[%s558 + $0xc2] sm:$0xff]
    %v602 = vld [vmem:[%s558 + $0xd2] sm:$0xff]
    %v603 = vld [vmem:[%s558 + $0xe2] sm:$0xff]
    %v604 = vld [vmem:[%s558 + $0xf2] sm:$0xff]
    %v605 = vld [vmem:[%s558 + $0x102] sm:$0xff]
    %v606 = vld [vmem:[%s558 + $0x112] sm:$0xff]
    %s607 = scalar_lea.vmem [#allocation2], 32
    %v608 = vld [vmem:[%s607 + $0x1] sm:$0xff]
    %v609 = vld [vmem:[%s607 + $0x11] sm:$0xff]
    %v610 = vld [vmem:[%s607 + $0x21] sm:$0xff]
    %v611 = vld [vmem:[%s607 + $0x31] sm:$0xff]
    %v612 = vld [vmem:[%s607 + $0x41] sm:$0xff]
    %v613 = vld [vmem:[%s607 + $0x51] sm:$0xff]
    %v614 = vld [vmem:[%s607 + $0x61] sm:$0xff]
    %v615 = vld [vmem:[%s607 + $0x71] sm:$0xff]
    %v616 = vld [vmem:[%s607 + $0xa1] sm:$0xff]
    %v617 = vld [vmem:[%s607 + $0xb1] sm:$0xff]
    %v618 = vld [vmem:[%s607 + $0xc1] sm:$0xff]
    %v619 = vld [vmem:[%s607 + $0xd1] sm:$0xff]
    %v620 = vld [vmem:[%s607 + $0xe1] sm:$0xff]
    %v621 = vld [vmem:[%s607 + $0xf1] sm:$0xff]
    %v622 = vld [vmem:[%s607 + $0x101] sm:$0xff]
    %v623 = vld [vmem:[%s607 + $0x111] sm:$0xff]
    %v624 = vld [vmem:[%s607 + $0x2] sm:$0xff]
    %v625 = vld [vmem:[%s607 + $0x12] sm:$0xff]
    %v626 = vld [vmem:[%s607 + $0x22] sm:$0xff]
    %v627 = vld [vmem:[%s607 + $0x32] sm:$0xff]
    %v628 = vld [vmem:[%s607 + $0x42] sm:$0xff]
    %v629 = vld [vmem:[%s607 + $0x52] sm:$0xff]
    %v630 = vld [vmem:[%s607 + $0x62] sm:$0xff]
    %v631 = vld [vmem:[%s607 + $0x72] sm:$0xff]
    %v632 = vld [vmem:[%s607 + $0xa2] sm:$0xff]
    %v633 = vld [vmem:[%s607 + $0xb2] sm:$0xff]
    %v634 = vld [vmem:[%s607 + $0xc2] sm:$0xff]
    %v635 = vld [vmem:[%s607 + $0xd2] sm:$0xff]
    %v636 = vld [vmem:[%s607 + $0xe2] sm:$0xff]
    %v637 = vld [vmem:[%s607 + $0xf2] sm:$0xff]
    %v638 = vld [vmem:[%s607 + $0x102] sm:$0xff]
    %v639 = vld [vmem:[%s607 + $0x112] sm:$0xff]
    %v640 = vmax.f32 %v575, %v591
    %v641 = vmax.f32 %v576, %v592
    %v642 = vmax.f32 %v577, %v593
    %v643 = vmax.f32 %v578, %v594
    %v644 = vmax.f32 %v579, %v595
    %v645 = vmax.f32 %v580, %v596
    %v646 = vmax.f32 %v581, %v597
    %v647 = vmax.f32 %v582, %v598
    %v648 = vmax.f32 %v583, %v599
    %v649 = vmax.f32 %v584, %v600
    %v650 = vmax.f32 %v585, %v601
    %v651 = vmax.f32 %v586, %v602
    %v652 = vmax.f32 %v587, %v603
    %v653 = vmax.f32 %v588, %v604
    %v654 = vmax.f32 %v589, %v605
    %v655 = vmax.f32 %v590, %v606
    %v656 = vmax.f32 %v608, %v624
    %v657 = vmax.f32 %v609, %v625
    %v658 = vmax.f32 %v610, %v626
    %v659 = vmax.f32 %v611, %v627
    %v660 = vmax.f32 %v612, %v628
    %v661 = vmax.f32 %v613, %v629
    %v662 = vmax.f32 %v614, %v630
    %v663 = vmax.f32 %v615, %v631
    %v664 = vmax.f32 %v616, %v632
    %v665 = vmax.f32 %v617, %v633
    %v666 = vmax.f32 %v618, %v634
    %v667 = vmax.f32 %v619, %v635
    %v668 = vmax.f32 %v620, %v636
    %v669 = vmax.f32 %v621, %v637
    %v670 = vmax.f32 %v622, %v638
    %v671 = vmax.f32 %v623, %v639
    %v672 = vmax.f32 %v640, %v656
    %v673 = vmax.f32 %v641, %v657
    %v674 = vmax.f32 %v642, %v658
    %v675 = vmax.f32 %v643, %v659
    %v676 = vmax.f32 %v644, %v660
    %v677 = vmax.f32 %v645, %v661
    %v678 = vmax.f32 %v646, %v662
    %v679 = vmax.f32 %v647, %v663
    %v680 = vmax.f32 %v648, %v664
    %v681 = vmax.f32 %v649, %v665
    %v682 = vmax.f32 %v650, %v666
    %v683 = vmax.f32 %v651, %v667
    %v684 = vmax.f32 %v652, %v668
    %v685 = vmax.f32 %v653, %v669
    %v686 = vmax.f32 %v654, %v670
    %v687 = vmax.f32 %v655, %v671
    %688 = vst.msk [vmem:[%s558 + $0x1] sm:$0xff] %vm506, %v672
    %689 = vst.msk [vmem:[%s558 + $0x11] sm:$0xff] %vm506, %v673
    %690 = vst.msk [vmem:[%s558 + $0x21] sm:$0xff] %vm506, %v674
    %691 = vst.msk [vmem:[%s558 + $0x31] sm:$0xff] %vm506, %v675
    %692 = vst.msk [vmem:[%s558 + $0x41] sm:$0xff] %vm506, %v676
    %693 = vst.msk [vmem:[%s558 + $0x51] sm:$0xff] %vm506, %v677
    %694 = vst.msk [vmem:[%s558 + $0x61] sm:$0xff] %vm506, %v678
    %695 = vst.msk [vmem:[%s558 + $0x71] sm:$0xff] %vm506, %v679
    %696 = vst.msk [vmem:[%s558 + $0xa1] sm:$0xff] %vm506, %v680
    %697 = vst.msk [vmem:[%s558 + $0xb1] sm:$0xff] %vm506, %v681
    %698 = vst.msk [vmem:[%s558 + $0xc1] sm:$0xff] %vm506, %v682
    %699 = vst.msk [vmem:[%s558 + $0xd1] sm:$0xff] %vm506, %v683
    %700 = vst.msk [vmem:[%s558 + $0xe1] sm:$0xff] %vm506, %v684
    %701 = vst.msk [vmem:[%s558 + $0xf1] sm:$0xff] %vm506, %v685
    %702 = vst.msk [vmem:[%s558 + $0x101] sm:$0xff] %vm506, %v686
    %703 = vst.msk [vmem:[%s558 + $0x111] sm:$0xff] %vm506, %v687
    %v704 = vld [vmem:[#allocation2] ss:$2 sm:$0xf]
    %s705 = scalar_lea.vmem [#allocation2], 32
    %v706 = vld [vmem:[%s705] ss:$2 sm:$0xf]
    %s707 = scalar_lea.vmem [#allocation2], 64
    %v708 = vld [vmem:[%s707] ss:$2 sm:$0xf]
    %s709 = scalar_lea.vmem [#allocation2], 96
    %v710 = vld [vmem:[%s709] ss:$2 sm:$0xf]
    %s711 = scalar_lea.vmem [#allocation2], 160
    %v712 = vld [vmem:[%s711] ss:$2 sm:$0xf]
    %s713 = scalar_lea.vmem [#allocation2], 192
    %v714 = vld [vmem:[%s713] ss:$2 sm:$0xf]
    %s715 = scalar_lea.vmem [#allocation2], 224
    %v716 = vld [vmem:[%s715] ss:$2 sm:$0xf]
    %s717 = scalar_lea.vmem [#allocation2], 256
    %v718 = vld [vmem:[%s717] ss:$2 sm:$0xf]
    %s719 = scalar_lea.vmem [#allocation2], 1
    %v720 = vld [vmem:[%s719] ss:$2 sm:$0xf]
    %s721 = scalar_lea.vmem [#allocation2], 33
    %v722 = vld [vmem:[%s721] ss:$2 sm:$0xf]
    %s723 = scalar_lea.vmem [#allocation2], 65
    %v724 = vld [vmem:[%s723] ss:$2 sm:$0xf]
    %s725 = scalar_lea.vmem [#allocation2], 97
    %v726 = vld [vmem:[%s725] ss:$2 sm:$0xf]
    %s727 = scalar_lea.vmem [#allocation2], 161
    %v728 = vld [vmem:[%s727] ss:$2 sm:$0xf]
    %s729 = scalar_lea.vmem [#allocation2], 193
    %v730 = vld [vmem:[%s729] ss:$2 sm:$0xf]
    %s731 = scalar_lea.vmem [#allocation2], 225
    %v732 = vld [vmem:[%s731] ss:$2 sm:$0xf]
    %s733 = scalar_lea.vmem [#allocation2], 257
    %v734 = vld [vmem:[%s733] ss:$2 sm:$0xf]
    %s735 = scalar_lea.vmem [#allocation2], 2
    %v736 = vld [vmem:[%s735] ss:$2 sm:$0xf]
    %s737 = scalar_lea.vmem [#allocation2], 34
    %v738 = vld [vmem:[%s737] ss:$2 sm:$0xf]
    %s739 = scalar_lea.vmem [#allocation2], 66
    %v740 = vld [vmem:[%s739] ss:$2 sm:$0xf]
    %s741 = scalar_lea.vmem [#allocation2], 98
    %v742 = vld [vmem:[%s741] ss:$2 sm:$0xf]
    %s743 = scalar_lea.vmem [#allocation2], 162
    %v744 = vld [vmem:[%s743] ss:$2 sm:$0xf]
    %s745 = scalar_lea.vmem [#allocation2], 194
    %v746 = vld [vmem:[%s745] ss:$2 sm:$0xf]
    %s747 = scalar_lea.vmem [#allocation2], 226
    %v748 = vld [vmem:[%s747] ss:$2 sm:$0xf]
    %s749 = scalar_lea.vmem [#allocation2], 258
    %v750 = vld [vmem:[%s749] ss:$2 sm:$0xf]
    %v751 = vld [vmem:[%s558] ss:$2 sm:$0xf]
    %s752 = scalar_lea.vmem %s558, 32 [#allocation2]
    %v753 = vld [vmem:[%s752] ss:$2 sm:$0xf]
    %s754 = scalar_lea.vmem %s558, 64 [#allocation2]
    %v755 = vld [vmem:[%s754] ss:$2 sm:$0xf]
    %s756 = scalar_lea.vmem %s558, 96 [#allocation2]
    %v757 = vld [vmem:[%s756] ss:$2 sm:$0xf]
    %s758 = scalar_lea.vmem %s558, 160 [#allocation2]
    %v759 = vld [vmem:[%s758] ss:$2 sm:$0xf]
    %s760 = scalar_lea.vmem %s558, 192 [#allocation2]
    %v761 = vld [vmem:[%s760] ss:$2 sm:$0xf]
    %s762 = scalar_lea.vmem %s558, 224 [#allocation2]
    %v763 = vld [vmem:[%s762] ss:$2 sm:$0xf]
    %s764 = scalar_lea.vmem %s558, 256 [#allocation2]
    %v765 = vld [vmem:[%s764] ss:$2 sm:$0xf]
    %s766 = scalar_lea.vmem %s558, 1 [#allocation2]
    %v767 = vld [vmem:[%s766] ss:$2 sm:$0xf]
    %s768 = scalar_lea.vmem %s558, 33 [#allocation2]
    %v769 = vld [vmem:[%s768] ss:$2 sm:$0xf]
    %s770 = scalar_lea.vmem %s558, 65 [#allocation2]
    %v771 = vld [vmem:[%s770] ss:$2 sm:$0xf]
    %s772 = scalar_lea.vmem %s558, 97 [#allocation2]
    %v773 = vld [vmem:[%s772] ss:$2 sm:$0xf]
    %s774 = scalar_lea.vmem %s558, 161 [#allocation2]
    %v775 = vld [vmem:[%s774] ss:$2 sm:$0xf]
    %s776 = scalar_lea.vmem %s558, 193 [#allocation2]
    %v777 = vld [vmem:[%s776] ss:$2 sm:$0xf]
    %s778 = scalar_lea.vmem %s558, 225 [#allocation2]
    %v779 = vld [vmem:[%s778] ss:$2 sm:$0xf]
    %s780 = scalar_lea.vmem %s558, 257 [#allocation2]
    %v781 = vld [vmem:[%s780] ss:$2 sm:$0xf]
    %s782 = scalar_lea.vmem %s558, 2 [#allocation2]
    %v783 = vld [vmem:[%s782] ss:$2 sm:$0xf]
    %s784 = scalar_lea.vmem %s558, 34 [#allocation2]
    %v785 = vld [vmem:[%s784] ss:$2 sm:$0xf]
    %s786 = scalar_lea.vmem %s558, 66 [#allocation2]
    %v787 = vld [vmem:[%s786] ss:$2 sm:$0xf]
    %s788 = scalar_lea.vmem %s558, 98 [#allocation2]
    %v789 = vld [vmem:[%s788] ss:$2 sm:$0xf]
    %s790 = scalar_lea.vmem %s558, 162 [#allocation2]
    %v791 = vld [vmem:[%s790] ss:$2 sm:$0xf]
    %s792 = scalar_lea.vmem %s558, 194 [#allocation2]
    %v793 = vld [vmem:[%s792] ss:$2 sm:$0xf]
    %s794 = scalar_lea.vmem %s558, 226 [#allocation2]
    %v795 = vld [vmem:[%s794] ss:$2 sm:$0xf]
    %s796 = scalar_lea.vmem %s558, 258 [#allocation2]
    %v797 = vld [vmem:[%s796] ss:$2 sm:$0xf]
    %v798 = vld [vmem:[%s607] ss:$2 sm:$0xf]
    %s799 = scalar_lea.vmem %s607, 32 [#allocation2]
    %v800 = vld [vmem:[%s799] ss:$2 sm:$0xf]
    %s801 = scalar_lea.vmem %s607, 64 [#allocation2]
    %v802 = vld [vmem:[%s801] ss:$2 sm:$0xf]
    %s803 = scalar_lea.vmem %s607, 96 [#allocation2]
    %v804 = vld [vmem:[%s803] ss:$2 sm:$0xf]
    %s805 = scalar_lea.vmem %s607, 160 [#allocation2]
    %v806 = vld [vmem:[%s805] ss:$2 sm:$0xf]
    %s807 = scalar_lea.vmem %s607, 192 [#allocation2]
    %v808 = vld [vmem:[%s807] ss:$2 sm:$0xf]
    %s809 = scalar_lea.vmem %s607, 224 [#allocation2]
    %v810 = vld [vmem:[%s809] ss:$2 sm:$0xf]
    %s811 = scalar_lea.vmem %s607, 256 [#allocation2]
    %v812 = vld [vmem:[%s811] ss:$2 sm:$0xf]
    %s813 = scalar_lea.vmem %s607, 1 [#allocation2]
    %v814 = vld [vmem:[%s813] ss:$2 sm:$0xf]
    %s815 = scalar_lea.vmem %s607, 33 [#allocation2]
    %v816 = vld [vmem:[%s815] ss:$2 sm:$0xf]
    %s817 = scalar_lea.vmem %s607, 65 [#allocation2]
    %v818 = vld [vmem:[%s817] ss:$2 sm:$0xf]
    %s819 = scalar_lea.vmem %s607, 97 [#allocation2]
    %v820 = vld [vmem:[%s819] ss:$2 sm:$0xf]
    %s821 = scalar_lea.vmem %s607, 161 [#allocation2]
    %v822 = vld [vmem:[%s821] ss:$2 sm:$0xf]
    %s823 = scalar_lea.vmem %s607, 193 [#allocation2]
    %v824 = vld [vmem:[%s823] ss:$2 sm:$0xf]
    %s825 = scalar_lea.vmem %s607, 225 [#allocation2]
    %v826 = vld [vmem:[%s825] ss:$2 sm:$0xf]
    %s827 = scalar_lea.vmem %s607, 257 [#allocation2]
    %v828 = vld [vmem:[%s827] ss:$2 sm:$0xf]
    %s829 = scalar_lea.vmem %s607, 2 [#allocation2]
    %v830 = vld [vmem:[%s829] ss:$2 sm:$0xf]
    %s831 = scalar_lea.vmem %s607, 34 [#allocation2]
    %v832 = vld [vmem:[%s831] ss:$2 sm:$0xf]
    %s833 = scalar_lea.vmem %s607, 66 [#allocation2]
    %v834 = vld [vmem:[%s833] ss:$2 sm:$0xf]
    %s835 = scalar_lea.vmem %s607, 98 [#allocation2]
    %v836 = vld [vmem:[%s835] ss:$2 sm:$0xf]
    %s837 = scalar_lea.vmem %s607, 162 [#allocation2]
    %v838 = vld [vmem:[%s837] ss:$2 sm:$0xf]
    %s839 = scalar_lea.vmem %s607, 194 [#allocation2]
    %v840 = vld [vmem:[%s839] ss:$2 sm:$0xf]
    %s841 = scalar_lea.vmem %s607, 226 [#allocation2]
    %v842 = vld [vmem:[%s841] ss:$2 sm:$0xf]
    %s843 = scalar_lea.vmem %s607, 258 [#allocation2]
    %v844 = vld [vmem:[%s843] ss:$2 sm:$0xf]
    %853 = vst [vmem:[#allocation1] ss:$2 sm:$0xff] %v704
    %s854 = scalar_lea.vmem [#allocation1], 1
    %855 = vst [vmem:[%s854] ss:$2 sm:$0xff] %v706
    %s856 = scalar_lea.vmem [#allocation1], 16
    %857 = vst [vmem:[%s856] ss:$2 sm:$0xff] %v708
    %s858 = scalar_lea.vmem [#allocation1], 17
    %859 = vst [vmem:[%s858] ss:$2 sm:$0xff] %v710
    %s860 = scalar_lea.vmem [#allocation1], 32
    %861 = vst [vmem:[%s860] ss:$2 sm:$0xff] %v712
    %s862 = scalar_lea.vmem [#allocation1], 33
    %863 = vst [vmem:[%s862] ss:$2 sm:$0xff] %v714
    %s864 = scalar_lea.vmem [#allocation1], 48
    %865 = vst [vmem:[%s864] ss:$2 sm:$0xff] %v716
    %s866 = scalar_lea.vmem [#allocation1], 49
    %867 = vst [vmem:[%s866] ss:$2 sm:$0xff] %v718
    %v868 = vld.sshfl [vmem:[#allocation1] sm:$0xff pattern:$0x75316420]
    %v869 = vld.sshfl [vmem:[#allocation1 + $0x10] sm:$0xff pattern:$0x75316420]
    %v870 = vld.sshfl [vmem:[#allocation1 + $0x20] sm:$0xff pattern:$0x75316420]
    %v871 = vld.sshfl [vmem:[#allocation1 + $0x30] sm:$0xff pattern:$0x75316420]
    %884 = vst [vmem:[#allocation1] ss:$2 sm:$0xff] %v720
    %s885 = scalar_lea.vmem [#allocation1], 1
    %886 = vst [vmem:[%s885] ss:$2 sm:$0xff] %v722
    %s887 = scalar_lea.vmem [#allocation1], 16
    %888 = vst [vmem:[%s887] ss:$2 sm:$0xff] %v724
    %s889 = scalar_lea.vmem [#allocation1], 17
    %890 = vst [vmem:[%s889] ss:$2 sm:$0xff] %v726
    %s891 = scalar_lea.vmem [#allocation1], 32
    %892 = vst [vmem:[%s891] ss:$2 sm:$0xff] %v728
    %s893 = scalar_lea.vmem [#allocation1], 33
    %894 = vst [vmem:[%s893] ss:$2 sm:$0xff] %v730
    %s895 = scalar_lea.vmem [#allocation1], 48
    %896 = vst [vmem:[%s895] ss:$2 sm:$0xff] %v732
    %s897 = scalar_lea.vmem [#allocation1], 49
    %898 = vst [vmem:[%s897] ss:$2 sm:$0xff] %v734
    %v899 = vld.sshfl [vmem:[#allocation1] sm:$0xff pattern:$0x75316420]
    %v900 = vld.sshfl [vmem:[#allocation1 + $0x10] sm:$0xff pattern:$0x75316420]
    %v901 = vld.sshfl [vmem:[#allocation1 + $0x20] sm:$0xff pattern:$0x75316420]
    %v902 = vld.sshfl [vmem:[#allocation1 + $0x30] sm:$0xff pattern:$0x75316420]
    %903 = vrot.lane.b32.xlu0 %v899, 8
    %v904 = vpop.permute.xlu0 %903
    %905 = vrot.lane.b32.xlu0 %v900, 8
    %v906 = vpop.permute.xlu0 %905
    %907 = vrot.lane.b32.xlu0 %v901, 8
    %v908 = vpop.permute.xlu0 %907
    %909 = vrot.lane.b32.xlu0 %v902, 8
    %v910 = vpop.permute.xlu0 %909
    %923 = vst [vmem:[#allocation1] ss:$2 sm:$0xff] %v736
    %s924 = scalar_lea.vmem [#allocation1], 1
    %925 = vst [vmem:[%s924] ss:$2 sm:$0xff] %v738
    %s926 = scalar_lea.vmem [#allocation1], 16
    %927 = vst [vmem:[%s926] ss:$2 sm:$0xff] %v740
    %s928 = scalar_lea.vmem [#allocation1], 17
    %929 = vst [vmem:[%s928] ss:$2 sm:$0xff] %v742
    %s930 = scalar_lea.vmem [#allocation1], 32
    %931 = vst [vmem:[%s930] ss:$2 sm:$0xff] %v744
    %s932 = scalar_lea.vmem [#allocation1], 33
    %933 = vst [vmem:[%s932] ss:$2 sm:$0xff] %v746
    %s934 = scalar_lea.vmem [#allocation1], 48
    %935 = vst [vmem:[%s934] ss:$2 sm:$0xff] %v748
    %s936 = scalar_lea.vmem [#allocation1], 49
    %937 = vst [vmem:[%s936] ss:$2 sm:$0xff] %v750
    %v938 = vld.sshfl [vmem:[#allocation1] sm:$0xff pattern:$0x75316420]
    %v939 = vld.sshfl [vmem:[#allocation1 + $0x10] sm:$0xff pattern:$0x75316420]
    %v940 = vld.sshfl [vmem:[#allocation1 + $0x20] sm:$0xff pattern:$0x75316420]
    %v941 = vld.sshfl [vmem:[#allocation1 + $0x30] sm:$0xff pattern:$0x75316420]
    %942 = vrot.lane.b32.xlu0 %v938, 16
    %v943 = vpop.permute.xlu0 %942
    %944 = vrot.lane.b32.xlu0 %v939, 16
    %v945 = vpop.permute.xlu0 %944
    %946 = vrot.lane.b32.xlu0 %v940, 16
    %v947 = vpop.permute.xlu0 %946
    %948 = vrot.lane.b32.xlu0 %v941, 16
    %v949 = vpop.permute.xlu0 %948
    %962 = vst [vmem:[#allocation1] ss:$2 sm:$0xff] %v751
    %s963 = scalar_lea.vmem [#allocation1], 1
    %964 = vst [vmem:[%s963] ss:$2 sm:$0xff] %v753
    %s965 = scalar_lea.vmem [#allocation1], 16
    %966 = vst [vmem:[%s965] ss:$2 sm:$0xff] %v755
    %s967 = scalar_lea.vmem [#allocation1], 17
    %968 = vst [vmem:[%s967] ss:$2 sm:$0xff] %v757
    %s969 = scalar_lea.vmem [#allocation1], 32
    %970 = vst [vmem:[%s969] ss:$2 sm:$0xff] %v759
    %s971 = scalar_lea.vmem [#allocation1], 33
    %972 = vst [vmem:[%s971] ss:$2 sm:$0xff] %v761
    %s973 = scalar_lea.vmem [#allocation1], 48
    %974 = vst [vmem:[%s973] ss:$2 sm:$0xff] %v763
    %s975 = scalar_lea.vmem [#allocation1], 49
    %976 = vst [vmem:[%s975] ss:$2 sm:$0xff] %v765
    %v977 = vld.sshfl [vmem:[#allocation1] sm:$0xff pattern:$0x75316420]
    %v978 = vld.sshfl [vmem:[#allocation1 + $0x10] sm:$0xff pattern:$0x75316420]
    %v979 = vld.sshfl [vmem:[#allocation1 + $0x20] sm:$0xff pattern:$0x75316420]
    %v980 = vld.sshfl [vmem:[#allocation1 + $0x30] sm:$0xff pattern:$0x75316420]
    %981 = vrot.lane.b32.xlu0 %v977, 24
    %v982 = vpop.permute.xlu0 %981
    %983 = vrot.lane.b32.xlu0 %v978, 24
    %v984 = vpop.permute.xlu0 %983
    %985 = vrot.lane.b32.xlu0 %v979, 24
    %v986 = vpop.permute.xlu0 %985
    %987 = vrot.lane.b32.xlu0 %v980, 24
    %v988 = vpop.permute.xlu0 %987
    %1001 = vst [vmem:[#allocation1] ss:$2 sm:$0xff] %v767
    %s1002 = scalar_lea.vmem [#allocation1], 1
    %1003 = vst [vmem:[%s1002] ss:$2 sm:$0xff] %v769
    %s1004 = scalar_lea.vmem [#allocation1], 16
    %1005 = vst [vmem:[%s1004] ss:$2 sm:$0xff] %v771
    %s1006 = scalar_lea.vmem [#allocation1], 17
    %1007 = vst [vmem:[%s1006] ss:$2 sm:$0xff] %v773
    %s1008 = scalar_lea.vmem [#allocation1], 32
    %1009 = vst [vmem:[%s1008] ss:$2 sm:$0xff] %v775
    %s1010 = scalar_lea.vmem [#allocation1], 33
    %1011 = vst [vmem:[%s1010] ss:$2 sm:$0xff] %v777
    %s1012 = scalar_lea.vmem [#allocation1], 48
    %1013 = vst [vmem:[%s1012] ss:$2 sm:$0xff] %v779
    %s1014 = scalar_lea.vmem [#allocation1], 49
    %1015 = vst [vmem:[%s1014] ss:$2 sm:$0xff] %v781
    %v1016 = vld.sshfl [vmem:[#allocation1] sm:$0xff pattern:$0x75316420]
    %v1017 = vld.sshfl [vmem:[#allocation1 + $0x10] sm:$0xff pattern:$0x75316420]
    %v1018 = vld.sshfl [vmem:[#allocation1 + $0x20] sm:$0xff pattern:$0x75316420]
    %v1019 = vld.sshfl [vmem:[#allocation1 + $0x30] sm:$0xff pattern:$0x75316420]
    %1020 = vrot.lane.b32.xlu0 %v1016, 32
    %v1021 = vpop.permute.xlu0 %1020
    %1022 = vrot.lane.b32.xlu0 %v1017, 32
    %v1023 = vpop.permute.xlu0 %1022
    %1024 = vrot.lane.b32.xlu0 %v1018, 32
    %v1025 = vpop.permute.xlu0 %1024
    %1026 = vrot.lane.b32.xlu0 %v1019, 32
    %v1027 = vpop.permute.xlu0 %1026
    %1040 = vst [vmem:[#allocation1] ss:$2 sm:$0xff] %v783
    %s1041 = scalar_lea.vmem [#allocation1], 1
    %1042 = vst [vmem:[%s1041] ss:$2 sm:$0xff] %v785
    %s1043 = scalar_lea.vmem [#allocation1], 16
    %1044 = vst [vmem:[%s1043] ss:$2 sm:$0xff] %v787
    %s1045 = scalar_lea.vmem [#allocation1], 17
    %1046 = vst [vmem:[%s1045] ss:$2 sm:$0xff] %v789
    %s1047 = scalar_lea.vmem [#allocation1], 32
    %1048 = vst [vmem:[%s1047] ss:$2 sm:$0xff] %v791
    %s1049 = scalar_lea.vmem [#allocation1], 33
    %1050 = vst [vmem:[%s1049] ss:$2 sm:$0xff] %v793
    %s1051 = scalar_lea.vmem [#allocation1], 48
    %1052 = vst [vmem:[%s1051] ss:$2 sm:$0xff] %v795
    %s1053 = scalar_lea.vmem [#allocation1], 49
    %1054 = vst [vmem:[%s1053] ss:$2 sm:$0xff] %v797
    %v1055 = vld.sshfl [vmem:[#allocation1] sm:$0xff pattern:$0x75316420]
    %v1056 = vld.sshfl [vmem:[#allocation1 + $0x10] sm:$0xff pattern:$0x75316420]
    %v1057 = vld.sshfl [vmem:[#allocation1 + $0x20] sm:$0xff pattern:$0x75316420]
    %v1058 = vld.sshfl [vmem:[#allocation1 + $0x30] sm:$0xff pattern:$0x75316420]
    %1059 = vrot.lane.b32.xlu0 %v1055, 40
    %v1060 = vpop.permute.xlu0 %1059
    %1061 = vrot.lane.b32.xlu0 %v1056, 40
    %v1062 = vpop.permute.xlu0 %1061
    %1063 = vrot.lane.b32.xlu0 %v1057, 40
    %v1064 = vpop.permute.xlu0 %1063
    %1065 = vrot.lane.b32.xlu0 %v1058, 40
    %v1066 = vpop.permute.xlu0 %1065
    %1079 = vst [vmem:[#allocation1] ss:$2 sm:$0xff] %v798
    %s1080 = scalar_lea.vmem [#allocation1], 1
    %1081 = vst [vmem:[%s1080] ss:$2 sm:$0xff] %v800
    %s1082 = scalar_lea.vmem [#allocation1], 16
    %1083 = vst [vmem:[%s1082] ss:$2 sm:$0xff] %v802
    %s1084 = scalar_lea.vmem [#allocation1], 17
    %1085 = vst [vmem:[%s1084] ss:$2 sm:$0xff] %v804
    %s1086 = scalar_lea.vmem [#allocation1], 32
    %1087 = vst [vmem:[%s1086] ss:$2 sm:$0xff] %v806
    %s1088 = scalar_lea.vmem [#allocation1], 33
    %1089 = vst [vmem:[%s1088] ss:$2 sm:$0xff] %v808
    %s1090 = scalar_lea.vmem [#allocation1], 48
    %1091 = vst [vmem:[%s1090] ss:$2 sm:$0xff] %v810
    %s1092 = scalar_lea.vmem [#allocation1], 49
    %1093 = vst [vmem:[%s1092] ss:$2 sm:$0xff] %v812
    %v1094 = vld.sshfl [vmem:[#allocation1] sm:$0xff pattern:$0x75316420]
    %v1095 = vld.sshfl [vmem:[#allocation1 + $0x10] sm:$0xff pattern:$0x75316420]
    %v1096 = vld.sshfl [vmem:[#allocation1 + $0x20] sm:$0xff pattern:$0x75316420]
    %v1097 = vld.sshfl [vmem:[#allocation1 + $0x30] sm:$0xff pattern:$0x75316420]
    %1098 = vrot.lane.b32.xlu0 %v1094, 48
    %v1099 = vpop.permute.xlu0 %1098
    %1100 = vrot.lane.b32.xlu0 %v1095, 48
    %v1101 = vpop.permute.xlu0 %1100
    %1102 = vrot.lane.b32.xlu0 %v1096, 48
    %v1103 = vpop.permute.xlu0 %1102
    %1104 = vrot.lane.b32.xlu0 %v1097, 48
    %v1105 = vpop.permute.xlu0 %1104
    %1118 = vst [vmem:[#allocation1] ss:$2 sm:$0xff] %v814
    %s1119 = scalar_lea.vmem [#allocation1], 1
    %1120 = vst [vmem:[%s1119] ss:$2 sm:$0xff] %v816
    %s1121 = scalar_lea.vmem [#allocation1], 16
    %1122 = vst [vmem:[%s1121] ss:$2 sm:$0xff] %v818
    %s1123 = scalar_lea.vmem [#allocation1], 17
    %1124 = vst [vmem:[%s1123] ss:$2 sm:$0xff] %v820
    %s1125 = scalar_lea.vmem [#allocation1], 32
    %1126 = vst [vmem:[%s1125] ss:$2 sm:$0xff] %v822
    %s1127 = scalar_lea.vmem [#allocation1], 33
    %1128 = vst [vmem:[%s1127] ss:$2 sm:$0xff] %v824
    %s1129 = scalar_lea.vmem [#allocation1], 48
    %1130 = vst [vmem:[%s1129] ss:$2 sm:$0xff] %v826
    %s1131 = scalar_lea.vmem [#allocation1], 49
    %1132 = vst [vmem:[%s1131] ss:$2 sm:$0xff] %v828
    %v1133 = vld.sshfl [vmem:[#allocation1] sm:$0xff pattern:$0x75316420]
    %v1134 = vld.sshfl [vmem:[#allocation1 + $0x10] sm:$0xff pattern:$0x75316420]
    %v1135 = vld.sshfl [vmem:[#allocation1 + $0x20] sm:$0xff pattern:$0x75316420]
    %v1136 = vld.sshfl [vmem:[#allocation1 + $0x30] sm:$0xff pattern:$0x75316420]
    %1137 = vrot.lane.b32.xlu0 %v1133, 56
    %v1138 = vpop.permute.xlu0 %1137
    %1139 = vrot.lane.b32.xlu0 %v1134, 56
    %v1140 = vpop.permute.xlu0 %1139
    %1141 = vrot.lane.b32.xlu0 %v1135, 56
    %v1142 = vpop.permute.xlu0 %1141
    %1143 = vrot.lane.b32.xlu0 %v1136, 56
    %v1144 = vpop.permute.xlu0 %1143
    %1157 = vst [vmem:[#allocation1] ss:$2 sm:$0xff] %v830
    %s1158 = scalar_lea.vmem [#allocation1], 1
    %1159 = vst [vmem:[%s1158] ss:$2 sm:$0xff] %v832
    %s1160 = scalar_lea.vmem [#allocation1], 16
    %1161 = vst [vmem:[%s1160] ss:$2 sm:$0xff] %v834
    %s1162 = scalar_lea.vmem [#allocation1], 17
    %1163 = vst [vmem:[%s1162] ss:$2 sm:$0xff] %v836
    %s1164 = scalar_lea.vmem [#allocation1], 32
    %1165 = vst [vmem:[%s1164] ss:$2 sm:$0xff] %v838
    %s1166 = scalar_lea.vmem [#allocation1], 33
    %1167 = vst [vmem:[%s1166] ss:$2 sm:$0xff] %v840
    %s1168 = scalar_lea.vmem [#allocation1], 48
    %1169 = vst [vmem:[%s1168] ss:$2 sm:$0xff] %v842
    %s1170 = scalar_lea.vmem [#allocation1], 49
    %1171 = vst [vmem:[%s1170] ss:$2 sm:$0xff] %v844
    %v1172 = vld.sshfl [vmem:[#allocation1] sm:$0xff pattern:$0x75316420]
    %v1173 = vld.sshfl [vmem:[#allocation1 + $0x10] sm:$0xff pattern:$0x75316420]
    %v1174 = vld.sshfl [vmem:[#allocation1 + $0x20] sm:$0xff pattern:$0x75316420]
    %v1175 = vld.sshfl [vmem:[#allocation1 + $0x30] sm:$0xff pattern:$0x75316420]
    %1176 = vrot.lane.b32.xlu0 %v1172, 64
    %v1177 = vpop.permute.xlu0 %1176
    %1178 = vrot.lane.b32.xlu0 %v1173, 64
    %v1179 = vpop.permute.xlu0 %1178
    %1180 = vrot.lane.b32.xlu0 %v1174, 64
    %v1181 = vpop.permute.xlu0 %1180
    %1182 = vrot.lane.b32.xlu0 %v1175, 64
    %v1183 = vpop.permute.xlu0 %1182
    %v1188 = vsel %vm506, %v868, %v904
    %v1189 = vsel %vm506, %v869, %v906
    %v1190 = vsel %vm506, %v870, %v908
    %v1191 = vsel %vm506, %v871, %v910
    %vm1192 = vcmask 130048
    %v1193 = vsel %vm1192, %v1188, %v943
    %v1194 = vsel %vm1192, %v1189, %v945
    %v1195 = vsel %vm1192, %v1190, %v947
    %v1196 = vsel %vm1192, %v1191, %v949
    %vm1197 = vcmask 195584
    %v1198 = vsel %vm1197, %v1193, %v982
    %v1199 = vsel %vm1197, %v1194, %v984
    %v1200 = vsel %vm1197, %v1195, %v986
    %v1201 = vsel %vm1197, %v1196, %v988
    %vm1202 = vcmask 261120
    %v1203 = vsel %vm1202, %v1198, %v1021
    %v1204 = vsel %vm1202, %v1199, %v1023
    %v1205 = vsel %vm1202, %v1200, %v1025
    %v1206 = vsel %vm1202, %v1201, %v1027
    %vm1207 = vcmask 326656
    %v1208 = vsel %vm1207, %v1203, %v1060
    %v1209 = vsel %vm1207, %v1204, %v1062
    %v1210 = vsel %vm1207, %v1205, %v1064
    %v1211 = vsel %vm1207, %v1206, %v1066
    %vm1212 = vcmask 392192
    %v1213 = vsel %vm1212, %v1208, %v1099
    %v1214 = vsel %vm1212, %v1209, %v1101
    %v1215 = vsel %vm1212, %v1210, %v1103
    %v1216 = vsel %vm1212, %v1211, %v1105
    %vm1217 = vcmask 457728
    %v1218 = vsel %vm1217, %v1213, %v1138
    %v1219 = vsel %vm1217, %v1214, %v1140
    %v1220 = vsel %vm1217, %v1215, %v1142
    %v1221 = vsel %vm1217, %v1216, %v1144
    %vm1222 = vcmask 523264
    %v1223 = vsel %vm1222, %v1218, %v1177
    %v1224 = vsel %vm1222, %v1219, %v1179
    %v1225 = vsel %vm1222, %v1220, %v1181
    %v1226 = vsel %vm1222, %v1221, %v1183
    %v1227 = vpack.c.bf16 %v1224, %v1223
    %v1228 = vpack.c.bf16 %v1226, %v1225
    %v1229 = vld [vmem:[%s3] sm:$0xf]
    %v1230 = vld [vmem:[%s3 + $0x4] sm:$0xf]
    %v1231 = vld [vmem:[%s3 + $0x8] sm:$0xf]
    %v1232 = vld [vmem:[%s3 + $0xc] sm:$0xf]
    %v1233 = vld [vmem:[%s3 + $0x10] sm:$0xf]
    %v1234 = vld [vmem:[%s3 + $0x14] sm:$0xf]
    %v1235 = vld [vmem:[%s3 + $0x18] sm:$0xf]
    %v1236 = vld [vmem:[%s3 + $0x1c] sm:$0xf]
    %v1237 = vld [vmem:[%s3 + $0x20] sm:$0xf]
    %v1238 = vld [vmem:[%s4] sm:$0x1]
    %v1240 = vperm.slane %v1238, 0
    %v1251 = vunpack.c.l.b16 %v1229
    %v1252 = vunpack.c.l.b16 %v1230
    %v1253 = vunpack.c.l.b16 %v1231
    %v1254 = vunpack.c.l.b16 %v1232
    %v1255 = vunpack.c.l.b16 %v1233
    %v1256 = vunpack.c.l.b16 %v1234
    %v1257 = vunpack.c.l.b16 %v1235
    %v1258 = vunpack.c.l.b16 %v1236
    %v1259 = vunpack.c.l.b16 %v1237
    %v1260 = vpack.c.b16 %v1252, %v1251
    %v1261 = vpack.c.b16 %v1254, %v1253
    %v1262 = vpack.c.b16 %v1256, %v1255
    %v1263 = vpack.c.b16 %v1258, %v1257
    %v1264 = vpack.c.b16 %v1259, %v1259
    %vm1269 = vcmask 588800
    %v1271 = vsel %vm1269, %v1227, 0
    %v1274 = vsel %vm1269, %v1228, 0
    %vm1276 = vcmask 1043456
    %v1278 = vsel %vm1276, %v1264, 0
    %1280 = vmatpush.bf16.msra.mxu0 0
    %1281 = vmatpush.bf16.msra.mxu0 0
    %1282 = vmatpush.bf16.msra.mxu0 0
    %1283 = vmatpush.bf16.msra.mxu0 %v1278
    %1284 = vmatpush.bf16.msra.mxu0 %v1263
    %1285 = vmatpush.bf16.msra.mxu0 %v1262
    %1286 = vmatpush.bf16.msra.mxu0 %v1261
    %1287 = vmatpush.bf16.msra.mxu0 %v1260
    %1288 = vmatmul.bf16.gmra.mxu0 %v1271
    %v1289 = vpop.f32.mrf.mxu0
    %v1290 = vadd.f32 %v1240, %v1289
    %v1291 = vpop.f32.mrf.mxu0
    %v1292 = vadd.f32 %v1240, %v1291
    %1293 = vmatmul.bf16.gmra.mxu0 %v1274
    %v1294 = vpop.f32.mrf.mxu0
    %v1295 = vadd.f32 %v1240, %v1294
    %v1296 = vpop.f32.mrf.mxu0
    %v1297 = vadd.f32 %v1240, %v1296
    %1298 = vdwg.mxu0
    %v1299 = vxor.u32 %v1290, 2147483648
    %v1300 = vxor.u32 %v1292, 2147483648
    %v1301 = vxor.u32 %v1295, 2147483648
    %v1302 = vxor.u32 %v1297, 2147483648
    %v1303 = vmul.f32 %v1299, 1.442695
    %v1304 = vpow.pop %v1303
    %v1305 = vmul.f32 %v1300, 1.442695
    %v1306 = vpow.pop %v1305
    %v1307 = vmul.f32 %v1301, 1.442695
    %v1308 = vpow.pop %v1307
    %v1309 = vmul.f32 %v1302, 1.442695
    %v1310 = vpow.pop %v1309
    %v1311 = vadd.f32 %v1304, 1.0
    %v1312 = vadd.f32 %v1306, 1.0
    %v1313 = vadd.f32 %v1308, 1.0
    %v1314 = vadd.f32 %v1310, 1.0
    %v1315 = vrcp.pop %v1311
    %v1316 = vmul.f32 %v1311, %v1315
    %v1317 = vsub.f32 1.0, %v1316
    %v1318 = vmul.f32 %v1315, %v1317
    %v1319 = vadd.f32 %v1315, %v1318
    %vm1320 = vweird.f32 %v1311
    %vm1321 = vweird.f32 %v1315
    %vm1322 = vmor %vm1320, %vm1321
    %v1323 = vsel %vm1322, %v1315, %v1319
    %v1324 = vand.u32 2147483647, %v1311
    %vm1325 = vcmp.eq.f32.partialorder %v1324, 8.507059e+37
    %v1326 = vand.u32 %v1311, 2147483648
    %v1327 = vor.u32 1.1754944e-38, %v1326
    %v1328 = vsel %vm1325, %v1327, %v1323
    %v1329 = vmul.f32 1.0, %v1328
    %v1330 = vrcp.pop %v1312
    %v1331 = vmul.f32 %v1312, %v1330
    %v1332 = vsub.f32 1.0, %v1331
    %v1333 = vmul.f32 %v1330, %v1332
    %v1334 = vadd.f32 %v1330, %v1333
    %vm1335 = vweird.f32 %v1312
    %vm1336 = vweird.f32 %v1330
    %vm1337 = vmor %vm1335, %vm1336
    %v1338 = vsel %vm1337, %v1330, %v1334
    %v1339 = vand.u32 2147483647, %v1312
    %vm1340 = vcmp.eq.f32.partialorder %v1339, 8.507059e+37
    %v1341 = vand.u32 %v1312, 2147483648
    %v1342 = vor.u32 1.1754944e-38, %v1341
    %v1343 = vsel %vm1340, %v1342, %v1338
    %v1344 = vmul.f32 1.0, %v1343
    %v1345 = vrcp.pop %v1313
    %v1346 = vmul.f32 %v1313, %v1345
    %v1347 = vsub.f32 1.0, %v1346
    %v1348 = vmul.f32 %v1345, %v1347
    %v1349 = vadd.f32 %v1345, %v1348
    %vm1350 = vweird.f32 %v1313
    %vm1351 = vweird.f32 %v1345
    %vm1352 = vmor %vm1350, %vm1351
    %v1353 = vsel %vm1352, %v1345, %v1349
    %v1354 = vand.u32 2147483647, %v1313
    %vm1355 = vcmp.eq.f32.partialorder %v1354, 8.507059e+37
    %v1356 = vand.u32 %v1313, 2147483648
    %v1357 = vor.u32 1.1754944e-38, %v1356
    %v1358 = vsel %vm1355, %v1357, %v1353
    %v1359 = vmul.f32 1.0, %v1358
    %v1360 = vrcp.pop %v1314
    %v1361 = vmul.f32 %v1314, %v1360
    %v1362 = vsub.f32 1.0, %v1361
    %v1363 = vmul.f32 %v1360, %v1362
    %v1364 = vadd.f32 %v1360, %v1363
    %vm1365 = vweird.f32 %v1314
    %vm1366 = vweird.f32 %v1360
    %vm1367 = vmor %vm1365, %vm1366
    %v1368 = vsel %vm1367, %v1360, %v1364
    %v1369 = vand.u32 2147483647, %v1314
    %vm1370 = vcmp.eq.f32.partialorder %v1369, 8.507059e+37
    %v1371 = vand.u32 %v1314, 2147483648
    %v1372 = vor.u32 1.1754944e-38, %v1371
    %v1373 = vsel %vm1370, %v1372, %v1368
    %v1374 = vmul.f32 1.0, %v1373
    %v1375 = vmul.f32 %v1290, %v1329
    %v1376 = vmul.f32 %v1292, %v1344
    %v1377 = vmul.f32 %v1295, %v1359
    %v1378 = vmul.f32 %v1297, %v1374
    %v1379 = vpack.c.bf16 %v1376, %v1375
    %v1380 = vpack.c.bf16 %v1378, %v1377
    %v1381 = vld [vmem:[%s5] sm:$0xf]
    %v1382 = vld [vmem:[%s6] sm:$0x1]
    %v1384 = vperm.slane %v1382, 0
    %v1387 = vsel %vm506, %v1379, 0
    %v1390 = vsel %vm506, %v1380, 0
    %v1393 = vsel %vm1276, %v1381, 0
    %1395 = vmatpush.bf16.msra.mxu0 0
    %1396 = vmatpush.bf16.msra.mxu0 0
    %1397 = vmatpush.bf16.msra.mxu0 0
    %1398 = vmatpush.bf16.msra.mxu0 0
    %1399 = vmatpush.bf16.msra.mxu0 0
    %1400 = vmatpush.bf16.msra.mxu0 0
    %1401 = vmatpush.bf16.msra.mxu0 0
    %1402 = vmatpush.bf16.msra.mxu0 %v1393
    %1403 = vmatmul.bf16.gmra.mxu0 %v1387
    %v1404 = vpop.f32.mrf.mxu0
    %v1405 = vadd.f32 %v1384, %v1404
    %v1406 = vpop.f32.mrf.mxu0
    %v1407 = vadd.f32 %v1384, %v1406
    %1408 = vmatmul.bf16.gmra.mxu0 %v1390
    %v1409 = vpop.f32.mrf.mxu0
    %v1410 = vadd.f32 %v1384, %v1409
    %v1411 = vpop.f32.mrf.mxu0
    %v1412 = vadd.f32 %v1384, %v1411
    %1413 = vdwg.mxu0
    %v1414 = vxor.u32 %v1405, 2147483648
    %v1415 = vxor.u32 %v1407, 2147483648
    %v1416 = vxor.u32 %v1410, 2147483648
    %v1417 = vxor.u32 %v1412, 2147483648
    %v1418 = vmul.f32 %v1414, 1.442695
    %v1419 = vpow.pop %v1418
    %v1420 = vmul.f32 %v1415, 1.442695
    %v1421 = vpow.pop %v1420
    %v1422 = vmul.f32 %v1416, 1.442695
    %v1423 = vpow.pop %v1422
    %v1424 = vmul.f32 %v1417, 1.442695
    %v1425 = vpow.pop %v1424
    %v1426 = vadd.f32 %v1419, 1.0
    %v1427 = vadd.f32 %v1421, 1.0
    %v1428 = vadd.f32 %v1423, 1.0
    %v1429 = vadd.f32 %v1425, 1.0
    %v1430 = vrcp.pop %v1426
    %v1431 = vmul.f32 %v1426, %v1430
    %v1432 = vsub.f32 1.0, %v1431
    %v1433 = vmul.f32 %v1430, %v1432
    %v1434 = vadd.f32 %v1430, %v1433
    %vm1435 = vweird.f32 %v1426
    %vm1436 = vweird.f32 %v1430
    %vm1437 = vmor %vm1435, %vm1436
    %v1438 = vsel %vm1437, %v1430, %v1434
    %v1439 = vand.u32 2147483647, %v1426
    %vm1440 = vcmp.eq.f32.partialorder %v1439, 8.507059e+37
    %v1441 = vand.u32 %v1426, 2147483648
    %v1442 = vor.u32 1.1754944e-38, %v1441
    %v1443 = vsel %vm1440, %v1442, %v1438
    %v1444 = vmul.f32 1.0, %v1443
    %v1445 = vrcp.pop %v1427
    %v1446 = vmul.f32 %v1427, %v1445
    %v1447 = vsub.f32 1.0, %v1446
    %v1448 = vmul.f32 %v1445, %v1447
    %v1449 = vadd.f32 %v1445, %v1448
    %vm1450 = vweird.f32 %v1427
    %vm1451 = vweird.f32 %v1445
    %vm1452 = vmor %vm1450, %vm1451
    %v1453 = vsel %vm1452, %v1445, %v1449
    %v1454 = vand.u32 2147483647, %v1427
    %vm1455 = vcmp.eq.f32.partialorder %v1454, 8.507059e+37
    %v1456 = vand.u32 %v1427, 2147483648
    %v1457 = vor.u32 1.1754944e-38, %v1456
    %v1458 = vsel %vm1455, %v1457, %v1453
    %v1459 = vmul.f32 1.0, %v1458
    %v1460 = vrcp.pop %v1428
    %v1461 = vmul.f32 %v1428, %v1460
    %v1462 = vsub.f32 1.0, %v1461
    %v1463 = vmul.f32 %v1460, %v1462
    %v1464 = vadd.f32 %v1460, %v1463
    %vm1465 = vweird.f32 %v1428
    %vm1466 = vweird.f32 %v1460
    %vm1467 = vmor %vm1465, %vm1466
    %v1468 = vsel %vm1467, %v1460, %v1464
    %v1469 = vand.u32 2147483647, %v1428
    %vm1470 = vcmp.eq.f32.partialorder %v1469, 8.507059e+37
    %v1471 = vand.u32 %v1428, 2147483648
    %v1472 = vor.u32 1.1754944e-38, %v1471
    %v1473 = vsel %vm1470, %v1472, %v1468
    %v1474 = vmul.f32 1.0, %v1473
    %v1475 = vrcp.pop %v1429
    %v1476 = vmul.f32 %v1429, %v1475
    %v1477 = vsub.f32 1.0, %v1476
    %v1478 = vmul.f32 %v1475, %v1477
    %v1479 = vadd.f32 %v1475, %v1478
    %vm1480 = vweird.f32 %v1429
    %vm1481 = vweird.f32 %v1475
    %vm1482 = vmor %vm1480, %vm1481
    %v1483 = vsel %vm1482, %v1475, %v1479
    %v1484 = vand.u32 2147483647, %v1429
    %vm1485 = vcmp.eq.f32.partialorder %v1484, 8.507059e+37
    %v1486 = vand.u32 %v1429, 2147483648
    %v1487 = vor.u32 1.1754944e-38, %v1486
    %v1488 = vsel %vm1485, %v1487, %v1483
    %v1489 = vmul.f32 1.0, %v1488
    %v1490 = vmul.f32 %v1405, %v1444
    %v1491 = vmul.f32 %v1407, %v1459
    %v1492 = vmul.f32 %v1410, %v1474
    %v1493 = vmul.f32 %v1412, %v1489
    %1494 = vst [vmem:[#allocation3] sm:$0xff] %v1490
    %1495 = vst [vmem:[#allocation3 + $0x8] sm:$0xff] %v1491
    %1496 = vst [vmem:[#allocation3 + $0x10] sm:$0xff] %v1492
    %1497 = vst [vmem:[#allocation3 + $0x18] sm:$0xff] %v1493
    // Predicated region
    $region30: #{tpu_custom_call.1} parent=1 // pred_check
      _
    $region31: #{tpu_custom_call.1} parent=1 // pred_check_branch
      %1499 = sbr.rel (0) target = $region33
    $region32: #{tpu_custom_call.1} parent=1 // pred_region
      %1501 = vsyncadd [#allocation4], 0
      %s1502 = sshll.u32 [#allocation3], 4
      %s1503 = int_to_ptr.vmem [resolvable:$true] %s1502
      %s1504 = sshll.u32 %s7, 4
      %s1505 = int_to_ptr.hbm [resolvable:$true] %s1504
      %1510 = dma.vmem_to_hbm [thread:$0]  %s1503, 512, %s1505, [#allocation4], 128, 128, 8
    $region33: #{tpu_custom_call.1} parent=1 // pred_fallthru
      _
    // Predicated region
    $region34: #{tpu_custom_call.1} parent=1 // pred_check
      _
    $region35: #{tpu_custom_call.1} parent=1 // pred_check_branch
      %1512 = sbr.rel (0) target = $region37
    $region36: #{tpu_custom_call.1} parent=1 // pred_region
      %1514 = dma.done [#allocation4], 512
    $region37: #{tpu_custom_call.1} parent=1 // pred_fallthru
      _
    %1515 = vsyncpa [#allocation4], 1

</llo_original>
